<compile_context>
chip_gen: v7x
topology: tpu7x:2x2x1
jax: 0.10.0
libtpu: 0.0.40
codegen_flags: <defaults>
</compile_context>

<pallas_src>
import functools

import jax
import jax.numpy as jnp
from jax import lax
from jax.experimental import pallas as pl
from jax.experimental.pallas import tpu as pltpu

LRELU_SLOPE = 0.1   # HiFi-GAN slope (not nn.LeakyReLU's default 0.01)

INTER_CH = 4      # channels of latent x
GIN_CH = 8        # speaker-embedding channels
UP_INIT_CH = 16   # upsample_initial_channel
UP_OUT_CH = 8     # channels after the (single) upsample stage
UP_K = 4          # ConvTranspose1d kernel size
UP_STRIDE = 2


# ----------------------------------------------------------------------------
# In-kernel helpers
# ----------------------------------------------------------------------------
def _leaky(x):
    return jnp.where(x > 0, x, LRELU_SLOPE * x)


def _fill_padded(pad_ref, x, pad):
    """Write [0*pad | x | 0*pad] into pad_ref[:C, :T+2*pad] (VMEM scratch)."""
    c, t = x.shape
    if pad > 0:
        zeros = jnp.zeros((c, pad), jnp.float32)
        pad_ref[:c, 0:pad] = zeros
        pad_ref[:c, pad + t:pad + t + pad] = zeros
    pad_ref[:c, pad:pad + t] = x


def _im2col_conv(pad_ref, col_ref, x, w_flat, *, K, dilation, pad):
    """'same' Conv1d as a single MXU contraction.

    x:      (C_in, T) value
    w_flat: (C_out, K*C_in) value, tap-major columns (col = k*C_in + c_in)
    Uses VMEM scratch for the zero-padded input and the stacked im2col matrix.
    Returns (C_out, T).
    """
    c_in, t = x.shape
    _fill_padded(pad_ref, x, pad)
    for k in range(K):                                   # K small & static
        off = k * dilation
        col_ref[k * c_in:(k + 1) * c_in, :t] = pad_ref[:c_in, off:off + t]
    return jnp.dot(w_flat, col_ref[:K * c_in, :t],
                   preferred_element_type=jnp.float32)


# ----------------------------------------------------------------------------
# Fused decode kernel: one batch element per grid step, all layers in VMEM.
# ----------------------------------------------------------------------------
def _decode_kernel(x_ref, g_ref,
                   pre_w_ref, pre_b_ref,
                   cond_w_ref, cond_b_ref,
                   up_we_ref, up_wo_ref, up_b_ref,
                   res_w0_ref, res_b0_ref,
                   res_w1_ref, res_b1_ref,
                   post_w_ref,
                   o_ref,
                   pad_ref, col_ref,
                   *, t_in):
    t = t_in
    t2 = 2 * t_in

    x = x_ref[0]                                  # (INTER_CH, T)
    g = g_ref[0]                                  # (GIN_CH, 1)

    # ---- conv_pre (k=7, pad=3) + speaker cond (k=1) + leaky_relu -----------
    h = _im2col_conv(pad_ref, col_ref, x, pre_w_ref[...], K=7, dilation=1, pad=3)
    h = h + pre_b_ref[...]
    cond = jnp.dot(cond_w_ref[...], g, preferred_element_type=jnp.float32)
    h = h + (cond + cond_b_ref[...])              # broadcast over time
    h = _leaky(h)                                 # (UP_INIT_CH, T)

    # ---- ConvTranspose1d (k=4, stride=2, pad=1) as polyphase ---------------
    # even phase: out[2m]   = W1 h[m]   + W3 h[m-1] + b
    # odd  phase: out[2m+1] = W0 h[m+1] + W2 h[m]   + b      (Wk = up_w[:,:,k].T)
    c = UP_INIT_CH
    _fill_padded(pad_ref, h, 1)                   # [0 | h | 0]  -> (C, T+2)
    col_ref[0:c, :t] = pad_ref[:c, 0:t]           # h[m-1]
    col_ref[c:2 * c, :t] = pad_ref[:c, 1:t + 1]   # h[m]
    even = jnp.dot(up_we_ref[...], col_ref[:2 * c, :t],
                   preferred_element_type=jnp.float32) + up_b_ref[...]
    col_ref[0:c, :t] = pad_ref[:c, 1:t + 1]       # h[m]
    col_ref[c:2 * c, :t] = pad_ref[:c, 2:t + 2]   # h[m+1]
    odd = jnp.dot(up_wo_ref[...], col_ref[:2 * c, :t],
                  preferred_element_type=jnp.float32) + up_b_ref[...]
    # Interleave the phases along time with 0/1 selection matmuls (stays on
    # the MXU, everything in VMEM).
    # TODO(synk): with a time-tiled grid, a strided lane store of the two
    # phases would avoid this O(T*2T) selection matmul for long audio.
    m_i = lax.broadcasted_iota(jnp.int32, (t, t2), 0)
    n_i = lax.broadcasted_iota(jnp.int32, (t, t2), 1)
    sel_e = (n_i == 2 * m_i).astype(jnp.float32)
    sel_o = (n_i == 2 * m_i + 1).astype(jnp.float32)
    u = (jnp.dot(even, sel_e, preferred_element_type=jnp.float32) +
         jnp.dot(odd, sel_o, preferred_element_type=jnp.float32))   # (UP_OUT_CH, 2T)

    # ---- ResBlock: (leaky -> dilated conv k=3 -> + residual) x 2 -----------
    r = _im2col_conv(pad_ref, col_ref, _leaky(u), res_w0_ref[...],
                     K=3, dilation=1, pad=1) + res_b0_ref[...]
    u = u + r
    r = _im2col_conv(pad_ref, col_ref, _leaky(u), res_w1_ref[...],
                     K=3, dilation=3, pad=3) + res_b1_ref[...]
    u = u + r

    # ---- conv_post (k=7, pad=3, no bias) + tanh ----------------------------
    y = _im2col_conv(pad_ref, col_ref, _leaky(u), post_w_ref[...],
                     K=7, dilation=1, pad=3)      # (1, 2T)
    o_ref[0] = jnp.tanh(y)


# ----------------------------------------------------------------------------
# Wrapper: weight re-layout (tiny, one-time) + single pallas_call.
# ----------------------------------------------------------------------------
def decode(params, x, g=None):
    """== ExportDecodeModel.forward(x, g) == model.decode(x, g)."""
    B, _, T = x.shape
    T2 = 2 * T
    f32 = jnp.float32

    def flat(w):   # (C_out, C_in, K) -> (C_out, K*C_in), tap-major columns
        c_out, c_in, k = w.shape
        return jnp.transpose(w, (0, 2, 1)).reshape(c_out, k * c_in).astype(f32)

    pre_w = flat(params["pre_w"])
    pre_b = params["pre_b"].reshape(-1, 1).astype(f32)
    cond_w = params["cond_w"][:, :, 0].astype(f32)
    cond_b = params["cond_b"].reshape(-1, 1).astype(f32)

    # polyphase ConvTranspose1d weights: up_w (C_in, C_out, K); Wk = up_w[:,:,k].T
    up_w = params["up_w"].astype(f32)
    Wk = [jnp.transpose(up_w[:, :, k]) for k in range(UP_K)]      # (C_out, C_in)
    up_we = jnp.concatenate([Wk[3], Wk[1]], axis=1)               # even: [W3 | W1]
    up_wo = jnp.concatenate([Wk[2], Wk[0]], axis=1)               # odd:  [W2 | W0]
    up_b = params["up_b"].reshape(-1, 1).astype(f32)

    res_w0 = flat(params["res_w0"])
    res_b0 = params["res_b0"].reshape(-1, 1).astype(f32)
    res_w1 = flat(params["res_w1"])
    res_b1 = params["res_b1"].reshape(-1, 1).astype(f32)
    post_w = flat(params["post_w"])

    if g is None:    # decode without speaker cond: make the cond term exactly 0
        g = jnp.zeros((B, GIN_CH, 1), f32)
        cond_w = jnp.zeros_like(cond_w)
        cond_b = jnp.zeros_like(cond_b)

    def full(a):
        nd = a.ndim
        return pl.BlockSpec(a.shape, lambda i, _nd=nd: (0,) * _nd)

    kernel = functools.partial(_decode_kernel, t_in=T)
    return pl.pallas_call(
        kernel,
        grid=(B,),
        in_specs=[
            pl.BlockSpec((1, INTER_CH, T), lambda i: (i, 0, 0)),
            pl.BlockSpec((1, GIN_CH, 1), lambda i: (i, 0, 0)),
            full(pre_w), full(pre_b), full(cond_w), full(cond_b),
            full(up_we), full(up_wo), full(up_b),
            full(res_w0), full(res_b0), full(res_w1), full(res_b1),
            full(post_w),
        ],
        out_specs=pl.BlockSpec((1, 1, T2), lambda i: (i, 0, 0)),
        out_shape=jax.ShapeDtypeStruct((B, 1, T2), jnp.float32),
        scratch_shapes=[
            pltpu.VMEM((UP_INIT_CH, T2 + 6), jnp.float32),   # padded input
            pltpu.VMEM((7 * UP_OUT_CH, T2), jnp.float32),    # im2col stack
        ],
        compiler_params=pltpu.CompilerParams(dimension_semantics=("parallel",)),
    )(x.astype(f32), g.astype(f32),
      pre_w, pre_b, cond_w, cond_b, up_we, up_wo, up_b,
      res_w0, res_b0, res_w1, res_b1, post_w)


# ----------------------------------------------------------------------------
# Synthetic decoder parameters (deterministic)
# ----------------------------------------------------------------------------
def init_params(key):
    ks = jax.random.split(key, 8)
    s = 0.1
    return {
        "pre_w": s * jax.random.normal(ks[0], (UP_INIT_CH, INTER_CH, 7), jnp.float32),
        "pre_b": s * jax.random.normal(ks[1], (UP_INIT_CH,), jnp.float32),
        "cond_w": s * jax.random.normal(ks[2], (UP_INIT_CH, GIN_CH, 1), jnp.float32),
        "cond_b": s * jax.random.normal(ks[3], (UP_INIT_CH,), jnp.float32),
        "up_w": s * jax.random.normal(ks[4], (UP_INIT_CH, UP_OUT_CH, UP_K), jnp.float32),
        "up_b": s * jax.random.normal(ks[5], (UP_OUT_CH,), jnp.float32),
        "res_w0": s * jax.random.normal(ks[6], (UP_OUT_CH, UP_OUT_CH, 3), jnp.float32),
        "res_b0": jnp.zeros((UP_OUT_CH,), jnp.float32),
        "res_w1": s * jax.random.normal(ks[7], (UP_OUT_CH, UP_OUT_CH, 3), jnp.float32),
        "res_b1": jnp.zeros((UP_OUT_CH,), jnp.float32),
        "post_w": s * jax.random.normal(jax.random.fold_in(key, 99),
                                        (1, UP_OUT_CH, 7), jnp.float32),
    }


# ----------------------------------------------------------------------------
# Plain-JAX reference (PyTorch semantics) for correctness checking
# ----------------------------------------------------------------------------
def _ref_conv1d(x, w, b, *, dilation=1, padding=0):
    B, C_in, T = x.shape
    C_out, _, K = w.shape
    T_out = T + 2 * padding - dilation * (K - 1)
    xp = jnp.pad(x, ((0, 0), (0, 0), (padding, padding)))
    acc = jnp.zeros((B, C_out, T_out), jnp.float32)
    for k in range(K):
        off = k * dilation
        acc = acc + jnp.einsum('oi,bit->bot', w[:, :, k], xp[:, :, off:off + T_out])
    return acc + b[None, :, None]


def _ref_decode(params, x, g):
    h = _ref_conv1d(x, params["pre_w"], params["pre_b"], padding=3)
    h = h + _ref_conv1d(g, params["cond_w"], params["cond_b"], padding=0)
    h = jnp.where(h > 0, h, LRELU_SLOPE * h)
    # ConvTranspose1d via zero-insertion + flipped/transposed-weight conv
    B, C_in, T = h.shape
    x_up = jnp.zeros((B, C_in, (T - 1) * UP_STRIDE + 1), h.dtype).at[:, :, ::UP_STRIDE].set(h)
    w_conv = jnp.flip(jnp.transpose(params["up_w"], (1, 0, 2)), axis=-1)
    h = _ref_conv1d(x_up, w_conv, params["up_b"], padding=UP_K - 1 - 1)
    for i, d in enumerate((1, 3)):
        t = jnp.where(h > 0, h, LRELU_SLOPE * h)
        t = _ref_conv1d(t, params[f"res_w{i}"], params[f"res_b{i}"], dilation=d, padding=d)
        h = h + t
    h = jnp.where(h > 0, h, LRELU_SLOPE * h)
    y = _ref_conv1d(h, params["post_w"], jnp.zeros((1,), jnp.float32), padding=3)
    return jnp.tanh(y)


if __name__ == "__main__":
    key = jax.random.PRNGKey(0)
    kx, kg, kp = jax.random.split(key, 3)

    B, T = 2, 64                         # T=64 -> output time dim 128 (lane-dense)
    x = jax.random.normal(kx, (B, INTER_CH, T), jnp.float32)   # latent z: (B, C, T)
    g = jax.random.normal(kg, (B, GIN_CH, 1), jnp.float32)     # speaker emb: (B, gin, 1)
    params = init_params(kp)

    y = jax.block_until_ready(decode(params, x, g))
    y_ref = jax.block_until_ready(_ref_decode(params, x, g))

    assert y.shape == (B, 1, 2 * T), y.shape
    assert bool(jnp.all(jnp.isfinite(y)))
    assert bool(jnp.all(jnp.abs(y) <= 1.0))                    # tanh output range
    assert bool(jnp.allclose(y, y_ref, atol=5e-3, rtol=5e-3)), \
        float(jnp.max(jnp.abs(y - y_ref)))
    print("KERNEL_OK")
</pallas_src>

<mosaic_0001>
module attributes {stable_mosaic.version = 11 : i64} {
  func.func @_decode_kernel(%arg0: i32, %arg1: memref<1x4x64xf32, #tpu.memory_space<vmem>>, %arg2: memref<1x8x1xf32, #tpu.memory_space<vmem>>, %arg3: memref<16x28xf32, #tpu.memory_space<vmem>>, %arg4: memref<16x1xf32, #tpu.memory_space<vmem>>, %arg5: memref<16x8xf32, #tpu.memory_space<vmem>>, %arg6: memref<16x1xf32, #tpu.memory_space<vmem>>, %arg7: memref<8x32xf32, #tpu.memory_space<vmem>>, %arg8: memref<8x32xf32, #tpu.memory_space<vmem>>, %arg9: memref<8x1xf32, #tpu.memory_space<vmem>>, %arg10: memref<8x24xf32, #tpu.memory_space<vmem>>, %arg11: memref<8x1xf32, #tpu.memory_space<vmem>>, %arg12: memref<8x24xf32, #tpu.memory_space<vmem>>, %arg13: memref<8x1xf32, #tpu.memory_space<vmem>>, %arg14: memref<1x56xf32, #tpu.memory_space<vmem>>, %arg15: memref<1x1x128xf32, #tpu.memory_space<vmem>>, %arg16: memref<16x134xf32, #tpu.memory_space<vmem>>, %arg17: memref<56x128xf32, #tpu.memory_space<vmem>>) attributes {dimension_semantics = [#tpu.dimension_semantics<parallel>], iteration_bounds = array<i64: 2>, scalar_prefetch = 0 : i64, scratch_operands = 2 : i64, tpu.core_type = #tpu.core_type<tc>, window_params = [{transform_indices = @transform_0, window_bounds = array<i64: 1, 4, 64>}, {transform_indices = @transform_1, window_bounds = array<i64: 1, 8, 1>}, {pipeline_mode = #tpu.pipeline_mode<synchronous>, transform_indices = @transform_2, window_bounds = array<i64: 16, 28>}, {pipeline_mode = #tpu.pipeline_mode<synchronous>, transform_indices = @transform_3, window_bounds = array<i64: 16, 1>}, {pipeline_mode = #tpu.pipeline_mode<synchronous>, transform_indices = @transform_4, window_bounds = array<i64: 16, 8>}, {pipeline_mode = #tpu.pipeline_mode<synchronous>, transform_indices = @transform_5, window_bounds = array<i64: 16, 1>}, {pipeline_mode = #tpu.pipeline_mode<synchronous>, transform_indices = @transform_6, window_bounds = array<i64: 8, 32>}, {pipeline_mode = #tpu.pipeline_mode<synchronous>, transform_indices = @transform_7, window_bounds = array<i64: 8, 32>}, {pipeline_mode = #tpu.pipeline_mode<synchronous>, transform_indices = @transform_8, window_bounds = array<i64: 8, 1>}, {pipeline_mode = #tpu.pipeline_mode<synchronous>, transform_indices = @transform_9, window_bounds = array<i64: 8, 24>}, {pipeline_mode = #tpu.pipeline_mode<synchronous>, transform_indices = @transform_10, window_bounds = array<i64: 8, 1>}, {pipeline_mode = #tpu.pipeline_mode<synchronous>, transform_indices = @transform_11, window_bounds = array<i64: 8, 24>}, {pipeline_mode = #tpu.pipeline_mode<synchronous>, transform_indices = @transform_12, window_bounds = array<i64: 8, 1>}, {pipeline_mode = #tpu.pipeline_mode<synchronous>, transform_indices = @transform_13, window_bounds = array<i64: 1, 56>}, {transform_indices = @transform_14, window_bounds = array<i64: 1, 1, 128>}]} {
    %c0 = arith.constant 0 : index
    %c0_0 = arith.constant 0 : index
    %c0_1 = arith.constant 0 : index
    %0 = vector.load %arg1[%c0, %c0_0, %c0_1] : memref<1x4x64xf32, #tpu.memory_space<vmem>>, vector<1x4x64xf32>
    %1 = vector.shape_cast %0 : vector<1x4x64xf32> to vector<4x64xf32>
    %c0_2 = arith.constant 0 : index
    %c0_3 = arith.constant 0 : index
    %c0_4 = arith.constant 0 : index
    %2 = vector.load %arg2[%c0_2, %c0_3, %c0_4] : memref<1x8x1xf32, #tpu.memory_space<vmem>>, vector<1x8x1xf32>
    %3 = vector.shape_cast %2 : vector<1x8x1xf32> to vector<8x1xf32>
    %c0_5 = arith.constant 0 : index
    %c0_6 = arith.constant 0 : index
    %4 = vector.load %arg3[%c0_5, %c0_6] : memref<16x28xf32, #tpu.memory_space<vmem>>, vector<16x28xf32>
    %cst = arith.constant 0.000000e+00 : f32
    %5 = vector.broadcast %cst : f32 to vector<4x3xf32>
    %c0_7 = arith.constant 0 : index
    %c0_8 = arith.constant 0 : index
    %6 = vector.load %arg16[%c0_7, %c0_8] : memref<16x134xf32, #tpu.memory_space<vmem>>, vector<4x3xf32>
    tpu.vector_store %arg16[%c0_7, %c0_8], %5 {strides = array<i32>} : memref<16x134xf32, #tpu.memory_space<vmem>>, vector<4x3xf32>,
    %c0_9 = arith.constant 0 : index
    %c67 = arith.constant 67 : index
    %7 = vector.load %arg16[%c0_9, %c67] : memref<16x134xf32, #tpu.memory_space<vmem>>, vector<4x3xf32>
    tpu.vector_store %arg16[%c0_9, %c67], %5 {strides = array<i32>} : memref<16x134xf32, #tpu.memory_space<vmem>>, vector<4x3xf32>,
    %c0_10 = arith.constant 0 : index
    %c3 = arith.constant 3 : index
    %8 = vector.load %arg16[%c0_10, %c3] : memref<16x134xf32, #tpu.memory_space<vmem>>, vector<4x64xf32>
    tpu.vector_store %arg16[%c0_10, %c3], %1 {strides = array<i32>} : memref<16x134xf32, #tpu.memory_space<vmem>>, vector<4x64xf32>,
    %c0_11 = arith.constant 0 : index
    %c0_12 = arith.constant 0 : index
    %9 = vector.load %arg16[%c0_11, %c0_12] : memref<16x134xf32, #tpu.memory_space<vmem>>, vector<4x64xf32>
    %c0_13 = arith.constant 0 : index
    %c0_14 = arith.constant 0 : index
    %10 = vector.load %arg17[%c0_13, %c0_14] : memref<56x128xf32, #tpu.memory_space<vmem>>, vector<4x64xf32>
    tpu.vector_store %arg17[%c0_13, %c0_14], %9 {strides = array<i32>} : memref<56x128xf32, #tpu.memory_space<vmem>>, vector<4x64xf32>,
    %c0_15 = arith.constant 0 : index
    %c1 = arith.constant 1 : index
    %11 = vector.load %arg16[%c0_15, %c1] : memref<16x134xf32, #tpu.memory_space<vmem>>, vector<4x64xf32>
    %c4 = arith.constant 4 : index
    %c0_16 = arith.constant 0 : index
    %12 = vector.load %arg17[%c4, %c0_16] : memref<56x128xf32, #tpu.memory_space<vmem>>, vector<4x64xf32>
    tpu.vector_store %arg17[%c4, %c0_16], %11 {strides = array<i32>} : memref<56x128xf32, #tpu.memory_space<vmem>>, vector<4x64xf32>,
    %c0_17 = arith.constant 0 : index
    %c2 = arith.constant 2 : index
    %13 = vector.load %arg16[%c0_17, %c2] : memref<16x134xf32, #tpu.memory_space<vmem>>, vector<4x64xf32>
    %c8 = arith.constant 8 : index
    %c0_18 = arith.constant 0 : index
    %14 = vector.load %arg17[%c8, %c0_18] : memref<56x128xf32, #tpu.memory_space<vmem>>, vector<4x64xf32>
    tpu.vector_store %arg17[%c8, %c0_18], %13 {strides = array<i32>} : memref<56x128xf32, #tpu.memory_space<vmem>>, vector<4x64xf32>,
    %c0_19 = arith.constant 0 : index
    %c3_20 = arith.constant 3 : index
    %15 = vector.load %arg16[%c0_19, %c3_20] : memref<16x134xf32, #tpu.memory_space<vmem>>, vector<4x64xf32>
    %c12 = arith.constant 12 : index
    %c0_21 = arith.constant 0 : index
    %16 = vector.load %arg17[%c12, %c0_21] : memref<56x128xf32, #tpu.memory_space<vmem>>, vector<4x64xf32>
    tpu.vector_store %arg17[%c12, %c0_21], %15 {strides = array<i32>} : memref<56x128xf32, #tpu.memory_space<vmem>>, vector<4x64xf32>,
    %c0_22 = arith.constant 0 : index
    %c4_23 = arith.constant 4 : index
    %17 = vector.load %arg16[%c0_22, %c4_23] : memref<16x134xf32, #tpu.memory_space<vmem>>, vector<4x64xf32>
    %c16 = arith.constant 16 : index
    %c0_24 = arith.constant 0 : index
    %18 = vector.load %arg17[%c16, %c0_24] : memref<56x128xf32, #tpu.memory_space<vmem>>, vector<4x64xf32>
    tpu.vector_store %arg17[%c16, %c0_24], %17 {strides = array<i32>} : memref<56x128xf32, #tpu.memory_space<vmem>>, vector<4x64xf32>,
    %c0_25 = arith.constant 0 : index
    %c5 = arith.constant 5 : index
    %19 = vector.load %arg16[%c0_25, %c5] : memref<16x134xf32, #tpu.memory_space<vmem>>, vector<4x64xf32>
    %c20 = arith.constant 20 : index
    %c0_26 = arith.constant 0 : index
    %20 = vector.load %arg17[%c20, %c0_26] : memref<56x128xf32, #tpu.memory_space<vmem>>, vector<4x64xf32>
    tpu.vector_store %arg17[%c20, %c0_26], %19 {strides = array<i32>} : memref<56x128xf32, #tpu.memory_space<vmem>>, vector<4x64xf32>,
    %c0_27 = arith.constant 0 : index
    %c6 = arith.constant 6 : index
    %21 = vector.load %arg16[%c0_27, %c6] : memref<16x134xf32, #tpu.memory_space<vmem>>, vector<4x64xf32>
    %c24 = arith.constant 24 : index
    %c0_28 = arith.constant 0 : index
    %22 = vector.load %arg17[%c24, %c0_28] : memref<56x128xf32, #tpu.memory_space<vmem>>, vector<4x64xf32>
    tpu.vector_store %arg17[%c24, %c0_28], %21 {strides = array<i32>} : memref<56x128xf32, #tpu.memory_space<vmem>>, vector<4x64xf32>,
    %c0_29 = arith.constant 0 : index
    %c0_30 = arith.constant 0 : index
    %23 = vector.load %arg17[%c0_29, %c0_30] : memref<56x128xf32, #tpu.memory_space<vmem>>, vector<28x64xf32>
    %cst_31 = arith.constant dense<0.000000e+00> : vector<16x64xf32>
    %24 = tpu.matmul %4, %23, %cst_31 {dimension_numbers = #tpu.dot_dimension_numbers<[1], [0], [0], [1], [0, 0, 1, 1], [], []>} : vector<16x28xf32>, vector<28x64xf32>, vector<16x64xf32> -> vector<16x64xf32>
    %c0_32 = arith.constant 0 : index
    %c0_33 = arith.constant 0 : index
    %25 = vector.load %arg4[%c0_32, %c0_33] : memref<16x1xf32, #tpu.memory_space<vmem>>, vector<16x1xf32>
    %26 = vector.broadcast %25 : vector<16x1xf32> to vector<16x64xf32>
    %27 = arith.addf %24, %26 : vector<16x64xf32>
    %c0_34 = arith.constant 0 : index
    %c0_35 = arith.constant 0 : index
    %28 = vector.load %arg5[%c0_34, %c0_35] : memref<16x8xf32, #tpu.memory_space<vmem>>, vector<16x8xf32>
    %cst_36 = arith.constant dense<0.000000e+00> : vector<16x1xf32>
    %29 = tpu.matmul %28, %3, %cst_36 {dimension_numbers = #tpu.dot_dimension_numbers<[1], [0], [0], [1], [0, 0, 1, 1], [], []>} : vector<16x8xf32>, vector<8x1xf32>, vector<16x1xf32> -> vector<16x1xf32>
    %c0_37 = arith.constant 0 : index
    %c0_38 = arith.constant 0 : index
    %30 = vector.load %arg6[%c0_37, %c0_38] : memref<16x1xf32, #tpu.memory_space<vmem>>, vector<16x1xf32>
    %31 = arith.addf %29, %30 : vector<16x1xf32>
    %32 = vector.broadcast %31 : vector<16x1xf32> to vector<16x64xf32>
    %33 = arith.addf %27, %32 : vector<16x64xf32>
    %cst_39 = arith.constant 0.000000e+00 : f32
    %34 = vector.broadcast %cst_39 : f32 to vector<16x64xf32>
    %35 = arith.cmpf ogt, %33, %34 : vector<16x64xf32>
    %cst_40 = arith.constant 1.000000e-01 : f32
    %36 = vector.broadcast %cst_40 : f32 to vector<16x64xf32>
    %37 = arith.mulf %36, %33 : vector<16x64xf32>
    %38 = arith.select %35, %33, %37 : vector<16x64xi1>, vector<16x64xf32>
    %cst_41 = arith.constant 0.000000e+00 : f32
    %39 = vector.broadcast %cst_41 : f32 to vector<16x1xf32>
    %c0_42 = arith.constant 0 : index
    %c0_43 = arith.constant 0 : index
    %40 = vector.load %arg16[%c0_42, %c0_43] : memref<16x134xf32, #tpu.memory_space<vmem>>, vector<16x1xf32>
    tpu.vector_store %arg16[%c0_42, %c0_43], %39 {strides = array<i32>} : memref<16x134xf32, #tpu.memory_space<vmem>>, vector<16x1xf32>,
    %c0_44 = arith.constant 0 : index
    %c65 = arith.constant 65 : index
    %41 = vector.load %arg16[%c0_44, %c65] : memref<16x134xf32, #tpu.memory_space<vmem>>, vector<16x1xf32>
    tpu.vector_store %arg16[%c0_44, %c65], %39 {strides = array<i32>} : memref<16x134xf32, #tpu.memory_space<vmem>>, vector<16x1xf32>,
    %c0_45 = arith.constant 0 : index
    %c1_46 = arith.constant 1 : index
    %42 = vector.load %arg16[%c0_45, %c1_46] : memref<16x134xf32, #tpu.memory_space<vmem>>, vector<16x64xf32>
    tpu.vector_store %arg16[%c0_45, %c1_46], %38 {strides = array<i32>} : memref<16x134xf32, #tpu.memory_space<vmem>>, vector<16x64xf32>,
    %c0_47 = arith.constant 0 : index
    %c0_48 = arith.constant 0 : index
    %43 = vector.load %arg16[%c0_47, %c0_48] : memref<16x134xf32, #tpu.memory_space<vmem>>, vector<16x64xf32>
    %c0_49 = arith.constant 0 : index
    %c0_50 = arith.constant 0 : index
    %44 = vector.load %arg17[%c0_49, %c0_50] : memref<56x128xf32, #tpu.memory_space<vmem>>, vector<16x64xf32>
    tpu.vector_store %arg17[%c0_49, %c0_50], %43 {strides = array<i32>} : memref<56x128xf32, #tpu.memory_space<vmem>>, vector<16x64xf32>,
    %c0_51 = arith.constant 0 : index
    %c1_52 = arith.constant 1 : index
    %45 = vector.load %arg16[%c0_51, %c1_52] : memref<16x134xf32, #tpu.memory_space<vmem>>, vector<16x64xf32>
    %c16_53 = arith.constant 16 : index
    %c0_54 = arith.constant 0 : index
    %46 = vector.load %arg17[%c16_53, %c0_54] : memref<56x128xf32, #tpu.memory_space<vmem>>, vector<16x64xf32>
    tpu.vector_store %arg17[%c16_53, %c0_54], %45 {strides = array<i32>} : memref<56x128xf32, #tpu.memory_space<vmem>>, vector<16x64xf32>,
    %c0_55 = arith.constant 0 : index
    %c0_56 = arith.constant 0 : index
    %47 = vector.load %arg7[%c0_55, %c0_56] : memref<8x32xf32, #tpu.memory_space<vmem>>, vector<8x32xf32>
    %c0_57 = arith.constant 0 : index
    %c0_58 = arith.constant 0 : index
    %48 = vector.load %arg17[%c0_57, %c0_58] : memref<56x128xf32, #tpu.memory_space<vmem>>, vector<32x64xf32>
    %cst_59 = arith.constant dense<0.000000e+00> : vector<8x64xf32>
    %49 = tpu.matmul %47, %48, %cst_59 {dimension_numbers = #tpu.dot_dimension_numbers<[1], [0], [0], [1], [0, 0, 1, 1], [], []>} : vector<8x32xf32>, vector<32x64xf32>, vector<8x64xf32> -> vector<8x64xf32>
    %c0_60 = arith.constant 0 : index
    %c0_61 = arith.constant 0 : index
    %50 = vector.load %arg9[%c0_60, %c0_61] : memref<8x1xf32, #tpu.memory_space<vmem>>, vector<8x1xf32>
    %51 = vector.broadcast %50 : vector<8x1xf32> to vector<8x64xf32>
    %52 = arith.addf %49, %51 : vector<8x64xf32>
    %c0_62 = arith.constant 0 : index
    %c1_63 = arith.constant 1 : index
    %53 = vector.load %arg16[%c0_62, %c1_63] : memref<16x134xf32, #tpu.memory_space<vmem>>, vector<16x64xf32>
    %c0_64 = arith.constant 0 : index
    %c0_65 = arith.constant 0 : index
    %54 = vector.load %arg17[%c0_64, %c0_65] : memref<56x128xf32, #tpu.memory_space<vmem>>, vector<16x64xf32>
    tpu.vector_store %arg17[%c0_64, %c0_65], %53 {strides = array<i32>} : memref<56x128xf32, #tpu.memory_space<vmem>>, vector<16x64xf32>,
    %c0_66 = arith.constant 0 : index
    %c2_67 = arith.constant 2 : index
    %55 = vector.load %arg16[%c0_66, %c2_67] : memref<16x134xf32, #tpu.memory_space<vmem>>, vector<16x64xf32>
    %c16_68 = arith.constant 16 : index
    %c0_69 = arith.constant 0 : index
    %56 = vector.load %arg17[%c16_68, %c0_69] : memref<56x128xf32, #tpu.memory_space<vmem>>, vector<16x64xf32>
    tpu.vector_store %arg17[%c16_68, %c0_69], %55 {strides = array<i32>} : memref<56x128xf32, #tpu.memory_space<vmem>>, vector<16x64xf32>,
    %c0_70 = arith.constant 0 : index
    %c0_71 = arith.constant 0 : index
    %57 = vector.load %arg8[%c0_70, %c0_71] : memref<8x32xf32, #tpu.memory_space<vmem>>, vector<8x32xf32>
    %c0_72 = arith.constant 0 : index
    %c0_73 = arith.constant 0 : index
    %58 = vector.load %arg17[%c0_72, %c0_73] : memref<56x128xf32, #tpu.memory_space<vmem>>, vector<32x64xf32>
    %cst_74 = arith.constant dense<0.000000e+00> : vector<8x64xf32>
    %59 = tpu.matmul %57, %58, %cst_74 {dimension_numbers = #tpu.dot_dimension_numbers<[1], [0], [0], [1], [0, 0, 1, 1], [], []>} : vector<8x32xf32>, vector<32x64xf32>, vector<8x64xf32> -> vector<8x64xf32>
    %c0_75 = arith.constant 0 : index
    %c0_76 = arith.constant 0 : index
    %60 = vector.load %arg9[%c0_75, %c0_76] : memref<8x1xf32, #tpu.memory_space<vmem>>, vector<8x1xf32>
    %61 = vector.broadcast %60 : vector<8x1xf32> to vector<8x64xf32>
    %62 = arith.addf %59, %61 : vector<8x64xf32>
    %63 = tpu.iota {dimensions = array<i32: 0>} : vector<64x128xi32>
    %64 = tpu.iota {dimensions = array<i32: 1>} : vector<64x128xi32>
    %c2_i32 = arith.constant 2 : i32
    %65 = vector.broadcast %c2_i32 : i32 to vector<64x128xi32>
    %66 = arith.muli %65, %63 : vector<64x128xi32>
    %67 = arith.cmpi eq, %64, %66 : vector<64x128xi32>
    %68 = arith.extui %67 : vector<64x128xi1> to vector<64x128xi32>
    %69 = arith.sitofp %68 : vector<64x128xi32> to vector<64x128xf32>
    %c2_i32_77 = arith.constant 2 : i32
    %70 = vector.broadcast %c2_i32_77 : i32 to vector<64x128xi32>
    %71 = arith.muli %70, %63 : vector<64x128xi32>
    %c1_i32 = arith.constant 1 : i32
    %72 = vector.broadcast %c1_i32 : i32 to vector<64x128xi32>
    %73 = arith.addi %71, %72 : vector<64x128xi32>
    %74 = arith.cmpi eq, %64, %73 : vector<64x128xi32>
    %75 = arith.extui %74 : vector<64x128xi1> to vector<64x128xi32>
    %76 = arith.sitofp %75 : vector<64x128xi32> to vector<64x128xf32>
    %cst_78 = arith.constant dense<0.000000e+00> : vector<8x128xf32>
    %77 = tpu.matmul %52, %69, %cst_78 {dimension_numbers = #tpu.dot_dimension_numbers<[1], [0], [0], [1], [0, 0, 1, 1], [], []>} : vector<8x64xf32>, vector<64x128xf32>, vector<8x128xf32> -> vector<8x128xf32>
    %cst_79 = arith.constant dense<0.000000e+00> : vector<8x128xf32>
    %78 = tpu.matmul %62, %76, %cst_79 {dimension_numbers = #tpu.dot_dimension_numbers<[1], [0], [0], [1], [0, 0, 1, 1], [], []>} : vector<8x64xf32>, vector<64x128xf32>, vector<8x128xf32> -> vector<8x128xf32>
    %79 = arith.addf %77, %78 : vector<8x128xf32>
    %cst_80 = arith.constant 0.000000e+00 : f32
    %80 = vector.broadcast %cst_80 : f32 to vector<8x128xf32>
    %81 = arith.cmpf ogt, %79, %80 : vector<8x128xf32>
    %cst_81 = arith.constant 1.000000e-01 : f32
    %82 = vector.broadcast %cst_81 : f32 to vector<8x128xf32>
    %83 = arith.mulf %82, %79 : vector<8x128xf32>
    %84 = arith.select %81, %79, %83 : vector<8x128xi1>, vector<8x128xf32>
    %c0_82 = arith.constant 0 : index
    %c0_83 = arith.constant 0 : index
    %85 = vector.load %arg10[%c0_82, %c0_83] : memref<8x24xf32, #tpu.memory_space<vmem>>, vector<8x24xf32>
    %cst_84 = arith.constant 0.000000e+00 : f32
    %86 = vector.broadcast %cst_84 : f32 to vector<8x1xf32>
    %c0_85 = arith.constant 0 : index
    %c0_86 = arith.constant 0 : index
    %87 = vector.load %arg16[%c0_85, %c0_86] : memref<16x134xf32, #tpu.memory_space<vmem>>, vector<8x1xf32>
    tpu.vector_store %arg16[%c0_85, %c0_86], %86 {strides = array<i32>} : memref<16x134xf32, #tpu.memory_space<vmem>>, vector<8x1xf32>,
    %c0_87 = arith.constant 0 : index
    %c129 = arith.constant 129 : index
    %88 = vector.load %arg16[%c0_87, %c129] : memref<16x134xf32, #tpu.memory_space<vmem>>, vector<8x1xf32>
    tpu.vector_store %arg16[%c0_87, %c129], %86 {strides = array<i32>} : memref<16x134xf32, #tpu.memory_space<vmem>>, vector<8x1xf32>,
    %c0_88 = arith.constant 0 : index
    %c1_89 = arith.constant 1 : index
    %89 = vector.load %arg16[%c0_88, %c1_89] : memref<16x134xf32, #tpu.memory_space<vmem>>, vector<8x128xf32>
    tpu.vector_store %arg16[%c0_88, %c1_89], %84 {strides = array<i32>} : memref<16x134xf32, #tpu.memory_space<vmem>>, vector<8x128xf32>,
    %c0_90 = arith.constant 0 : index
    %c0_91 = arith.constant 0 : index
    %90 = vector.load %arg16[%c0_90, %c0_91] : memref<16x134xf32, #tpu.memory_space<vmem>>, vector<8x128xf32>
    %c0_92 = arith.constant 0 : index
    %c0_93 = arith.constant 0 : index
    %91 = vector.load %arg17[%c0_92, %c0_93] : memref<56x128xf32, #tpu.memory_space<vmem>>, vector<8x128xf32>
    tpu.vector_store %arg17[%c0_92, %c0_93], %90 {strides = array<i32>} : memref<56x128xf32, #tpu.memory_space<vmem>>, vector<8x128xf32>,
    %c0_94 = arith.constant 0 : index
    %c1_95 = arith.constant 1 : index
    %92 = vector.load %arg16[%c0_94, %c1_95] : memref<16x134xf32, #tpu.memory_space<vmem>>, vector<8x128xf32>
    %c8_96 = arith.constant 8 : index
    %c0_97 = arith.constant 0 : index
    %93 = vector.load %arg17[%c8_96, %c0_97] : memref<56x128xf32, #tpu.memory_space<vmem>>, vector<8x128xf32>
    tpu.vector_store %arg17[%c8_96, %c0_97], %92 {strides = array<i32>} : memref<56x128xf32, #tpu.memory_space<vmem>>, vector<8x128xf32>,
    %c0_98 = arith.constant 0 : index
    %c2_99 = arith.constant 2 : index
    %94 = vector.load %arg16[%c0_98, %c2_99] : memref<16x134xf32, #tpu.memory_space<vmem>>, vector<8x128xf32>
    %c16_100 = arith.constant 16 : index
    %c0_101 = arith.constant 0 : index
    %95 = vector.load %arg17[%c16_100, %c0_101] : memref<56x128xf32, #tpu.memory_space<vmem>>, vector<8x128xf32>
    tpu.vector_store %arg17[%c16_100, %c0_101], %94 {strides = array<i32>} : memref<56x128xf32, #tpu.memory_space<vmem>>, vector<8x128xf32>,
    %c0_102 = arith.constant 0 : index
    %c0_103 = arith.constant 0 : index
    %96 = vector.load %arg17[%c0_102, %c0_103] : memref<56x128xf32, #tpu.memory_space<vmem>>, vector<24x128xf32>
    %cst_104 = arith.constant dense<0.000000e+00> : vector<8x128xf32>
    %97 = tpu.matmul %85, %96, %cst_104 {dimension_numbers = #tpu.dot_dimension_numbers<[1], [0], [0], [1], [0, 0, 1, 1], [], []>} : vector<8x24xf32>, vector<24x128xf32>, vector<8x128xf32> -> vector<8x128xf32>
    %c0_105 = arith.constant 0 : index
    %c0_106 = arith.constant 0 : index
    %98 = vector.load %arg11[%c0_105, %c0_106] : memref<8x1xf32, #tpu.memory_space<vmem>>, vector<8x1xf32>
    %99 = vector.broadcast %98 : vector<8x1xf32> to vector<8x128xf32>
    %100 = arith.addf %97, %99 : vector<8x128xf32>
    %101 = arith.addf %79, %100 : vector<8x128xf32>
    %cst_107 = arith.constant 0.000000e+00 : f32
    %102 = vector.broadcast %cst_107 : f32 to vector<8x128xf32>
    %103 = arith.cmpf ogt, %101, %102 : vector<8x128xf32>
    %cst_108 = arith.constant 1.000000e-01 : f32
    %104 = vector.broadcast %cst_108 : f32 to vector<8x128xf32>
    %105 = arith.mulf %104, %101 : vector<8x128xf32>
    %106 = arith.select %103, %101, %105 : vector<8x128xi1>, vector<8x128xf32>
    %c0_109 = arith.constant 0 : index
    %c0_110 = arith.constant 0 : index
    %107 = vector.load %arg12[%c0_109, %c0_110] : memref<8x24xf32, #tpu.memory_space<vmem>>, vector<8x24xf32>
    %cst_111 = arith.constant 0.000000e+00 : f32
    %108 = vector.broadcast %cst_111 : f32 to vector<8x3xf32>
    %c0_112 = arith.constant 0 : index
    %c0_113 = arith.constant 0 : index
    %109 = vector.load %arg16[%c0_112, %c0_113] : memref<16x134xf32, #tpu.memory_space<vmem>>, vector<8x3xf32>
    tpu.vector_store %arg16[%c0_112, %c0_113], %108 {strides = array<i32>} : memref<16x134xf32, #tpu.memory_space<vmem>>, vector<8x3xf32>,
    %c0_114 = arith.constant 0 : index
    %c131 = arith.constant 131 : index
    %110 = vector.load %arg16[%c0_114, %c131] : memref<16x134xf32, #tpu.memory_space<vmem>>, vector<8x3xf32>
    tpu.vector_store %arg16[%c0_114, %c131], %108 {strides = array<i32>} : memref<16x134xf32, #tpu.memory_space<vmem>>, vector<8x3xf32>,
    %c0_115 = arith.constant 0 : index
    %c3_116 = arith.constant 3 : index
    %111 = vector.load %arg16[%c0_115, %c3_116] : memref<16x134xf32, #tpu.memory_space<vmem>>, vector<8x128xf32>
    tpu.vector_store %arg16[%c0_115, %c3_116], %106 {strides = array<i32>} : memref<16x134xf32, #tpu.memory_space<vmem>>, vector<8x128xf32>,
    %c0_117 = arith.constant 0 : index
    %c0_118 = arith.constant 0 : index
    %112 = vector.load %arg16[%c0_117, %c0_118] : memref<16x134xf32, #tpu.memory_space<vmem>>, vector<8x128xf32>
    %c0_119 = arith.constant 0 : index
    %c0_120 = arith.constant 0 : index
    %113 = vector.load %arg17[%c0_119, %c0_120] : memref<56x128xf32, #tpu.memory_space<vmem>>, vector<8x128xf32>
    tpu.vector_store %arg17[%c0_119, %c0_120], %112 {strides = array<i32>} : memref<56x128xf32, #tpu.memory_space<vmem>>, vector<8x128xf32>,
    %c0_121 = arith.constant 0 : index
    %c3_122 = arith.constant 3 : index
    %114 = vector.load %arg16[%c0_121, %c3_122] : memref<16x134xf32, #tpu.memory_space<vmem>>, vector<8x128xf32>
    %c8_123 = arith.constant 8 : index
    %c0_124 = arith.constant 0 : index
    %115 = vector.load %arg17[%c8_123, %c0_124] : memref<56x128xf32, #tpu.memory_space<vmem>>, vector<8x128xf32>
    tpu.vector_store %arg17[%c8_123, %c0_124], %114 {strides = array<i32>} : memref<56x128xf32, #tpu.memory_space<vmem>>, vector<8x128xf32>,
    %c0_125 = arith.constant 0 : index
    %c6_126 = arith.constant 6 : index
    %116 = vector.load %arg16[%c0_125, %c6_126] : memref<16x134xf32, #tpu.memory_space<vmem>>, vector<8x128xf32>
    %c16_127 = arith.constant 16 : index
    %c0_128 = arith.constant 0 : index
    %117 = vector.load %arg17[%c16_127, %c0_128] : memref<56x128xf32, #tpu.memory_space<vmem>>, vector<8x128xf32>
    tpu.vector_store %arg17[%c16_127, %c0_128], %116 {strides = array<i32>} : memref<56x128xf32, #tpu.memory_space<vmem>>, vector<8x128xf32>,
    %c0_129 = arith.constant 0 : index
    %c0_130 = arith.constant 0 : index
    %118 = vector.load %arg17[%c0_129, %c0_130] : memref<56x128xf32, #tpu.memory_space<vmem>>, vector<24x128xf32>
    %cst_131 = arith.constant dense<0.000000e+00> : vector<8x128xf32>
    %119 = tpu.matmul %107, %118, %cst_131 {dimension_numbers = #tpu.dot_dimension_numbers<[1], [0], [0], [1], [0, 0, 1, 1], [], []>} : vector<8x24xf32>, vector<24x128xf32>, vector<8x128xf32> -> vector<8x128xf32>
    %c0_132 = arith.constant 0 : index
    %c0_133 = arith.constant 0 : index
    %120 = vector.load %arg13[%c0_132, %c0_133] : memref<8x1xf32, #tpu.memory_space<vmem>>, vector<8x1xf32>
    %121 = vector.broadcast %120 : vector<8x1xf32> to vector<8x128xf32>
    %122 = arith.addf %119, %121 : vector<8x128xf32>
    %123 = arith.addf %101, %122 : vector<8x128xf32>
    %cst_134 = arith.constant 0.000000e+00 : f32
    %124 = vector.broadcast %cst_134 : f32 to vector<8x128xf32>
    %125 = arith.cmpf ogt, %123, %124 : vector<8x128xf32>
    %cst_135 = arith.constant 1.000000e-01 : f32
    %126 = vector.broadcast %cst_135 : f32 to vector<8x128xf32>
    %127 = arith.mulf %126, %123 : vector<8x128xf32>
    %128 = arith.select %125, %123, %127 : vector<8x128xi1>, vector<8x128xf32>
    %c0_136 = arith.constant 0 : index
    %c0_137 = arith.constant 0 : index
    %129 = vector.load %arg14[%c0_136, %c0_137] : memref<1x56xf32, #tpu.memory_space<vmem>>, vector<1x56xf32>
    %cst_138 = arith.constant 0.000000e+00 : f32
    %130 = vector.broadcast %cst_138 : f32 to vector<8x3xf32>
    %c0_139 = arith.constant 0 : index
    %c0_140 = arith.constant 0 : index
    %131 = vector.load %arg16[%c0_139, %c0_140] : memref<16x134xf32, #tpu.memory_space<vmem>>, vector<8x3xf32>
    tpu.vector_store %arg16[%c0_139, %c0_140], %130 {strides = array<i32>} : memref<16x134xf32, #tpu.memory_space<vmem>>, vector<8x3xf32>,
    %c0_141 = arith.constant 0 : index
    %c131_142 = arith.constant 131 : index
    %132 = vector.load %arg16[%c0_141, %c131_142] : memref<16x134xf32, #tpu.memory_space<vmem>>, vector<8x3xf32>
    tpu.vector_store %arg16[%c0_141, %c131_142], %130 {strides = array<i32>} : memref<16x134xf32, #tpu.memory_space<vmem>>, vector<8x3xf32>,
    %c0_143 = arith.constant 0 : index
    %c3_144 = arith.constant 3 : index
    %133 = vector.load %arg16[%c0_143, %c3_144] : memref<16x134xf32, #tpu.memory_space<vmem>>, vector<8x128xf32>
    tpu.vector_store %arg16[%c0_143, %c3_144], %128 {strides = array<i32>} : memref<16x134xf32, #tpu.memory_space<vmem>>, vector<8x128xf32>,
    %c0_145 = arith.constant 0 : index
    %c0_146 = arith.constant 0 : index
    %134 = vector.load %arg16[%c0_145, %c0_146] : memref<16x134xf32, #tpu.memory_space<vmem>>, vector<8x128xf32>
    %c0_147 = arith.constant 0 : index
    %c0_148 = arith.constant 0 : index
    %135 = vector.load %arg17[%c0_147, %c0_148] : memref<56x128xf32, #tpu.memory_space<vmem>>, vector<8x128xf32>
    tpu.vector_store %arg17[%c0_147, %c0_148], %134 {strides = array<i32>} : memref<56x128xf32, #tpu.memory_space<vmem>>, vector<8x128xf32>,
    %c0_149 = arith.constant 0 : index
    %c1_150 = arith.constant 1 : index
    %136 = vector.load %arg16[%c0_149, %c1_150] : memref<16x134xf32, #tpu.memory_space<vmem>>, vector<8x128xf32>
    %c8_151 = arith.constant 8 : index
    %c0_152 = arith.constant 0 : index
    %137 = vector.load %arg17[%c8_151, %c0_152] : memref<56x128xf32, #tpu.memory_space<vmem>>, vector<8x128xf32>
    tpu.vector_store %arg17[%c8_151, %c0_152], %136 {strides = array<i32>} : memref<56x128xf32, #tpu.memory_space<vmem>>, vector<8x128xf32>,
    %c0_153 = arith.constant 0 : index
    %c2_154 = arith.constant 2 : index
    %138 = vector.load %arg16[%c0_153, %c2_154] : memref<16x134xf32, #tpu.memory_space<vmem>>, vector<8x128xf32>
    %c16_155 = arith.constant 16 : index
    %c0_156 = arith.constant 0 : index
    %139 = vector.load %arg17[%c16_155, %c0_156] : memref<56x128xf32, #tpu.memory_space<vmem>>, vector<8x128xf32>
    tpu.vector_store %arg17[%c16_155, %c0_156], %138 {strides = array<i32>} : memref<56x128xf32, #tpu.memory_space<vmem>>, vector<8x128xf32>,
    %c0_157 = arith.constant 0 : index
    %c3_158 = arith.constant 3 : index
    %140 = vector.load %arg16[%c0_157, %c3_158] : memref<16x134xf32, #tpu.memory_space<vmem>>, vector<8x128xf32>
    %c24_159 = arith.constant 24 : index
    %c0_160 = arith.constant 0 : index
    %141 = vector.load %arg17[%c24_159, %c0_160] : memref<56x128xf32, #tpu.memory_space<vmem>>, vector<8x128xf32>
    tpu.vector_store %arg17[%c24_159, %c0_160], %140 {strides = array<i32>} : memref<56x128xf32, #tpu.memory_space<vmem>>, vector<8x128xf32>,
    %c0_161 = arith.constant 0 : index
    %c4_162 = arith.constant 4 : index
    %142 = vector.load %arg16[%c0_161, %c4_162] : memref<16x134xf32, #tpu.memory_space<vmem>>, vector<8x128xf32>
    %c32 = arith.constant 32 : index
    %c0_163 = arith.constant 0 : index
    %143 = vector.load %arg17[%c32, %c0_163] : memref<56x128xf32, #tpu.memory_space<vmem>>, vector<8x128xf32>
    tpu.vector_store %arg17[%c32, %c0_163], %142 {strides = array<i32>} : memref<56x128xf32, #tpu.memory_space<vmem>>, vector<8x128xf32>,
    %c0_164 = arith.constant 0 : index
    %c5_165 = arith.constant 5 : index
    %144 = vector.load %arg16[%c0_164, %c5_165] : memref<16x134xf32, #tpu.memory_space<vmem>>, vector<8x128xf32>
    %c40 = arith.constant 40 : index
    %c0_166 = arith.constant 0 : index
    %145 = vector.load %arg17[%c40, %c0_166] : memref<56x128xf32, #tpu.memory_space<vmem>>, vector<8x128xf32>
    tpu.vector_store %arg17[%c40, %c0_166], %144 {strides = array<i32>} : memref<56x128xf32, #tpu.memory_space<vmem>>, vector<8x128xf32>,
    %c0_167 = arith.constant 0 : index
    %c6_168 = arith.constant 6 : index
    %146 = vector.load %arg16[%c0_167, %c6_168] : memref<16x134xf32, #tpu.memory_space<vmem>>, vector<8x128xf32>
    %c48 = arith.constant 48 : index
    %c0_169 = arith.constant 0 : index
    %147 = vector.load %arg17[%c48, %c0_169] : memref<56x128xf32, #tpu.memory_space<vmem>>, vector<8x128xf32>
    tpu.vector_store %arg17[%c48, %c0_169], %146 {strides = array<i32>} : memref<56x128xf32, #tpu.memory_space<vmem>>, vector<8x128xf32>,
    %c0_170 = arith.constant 0 : index
    %c0_171 = arith.constant 0 : index
    %148 = vector.load %arg17[%c0_170, %c0_171] : memref<56x128xf32, #tpu.memory_space<vmem>>, vector<56x128xf32>
    %cst_172 = arith.constant dense<0.000000e+00> : vector<1x128xf32>
    %149 = tpu.matmul %129, %148, %cst_172 {dimension_numbers = #tpu.dot_dimension_numbers<[1], [0], [0], [1], [0, 0, 1, 1], [], []>} : vector<1x56xf32>, vector<56x128xf32>, vector<1x128xf32> -> vector<1x128xf32>
    %150 = math.tanh %149 : vector<1x128xf32>
    %c0_173 = arith.constant 0 : index
    %c0_174 = arith.constant 0 : index
    %c0_175 = arith.constant 0 : index
    %151 = vector.load %arg15[%c0_173, %c0_174, %c0_175] : memref<1x1x128xf32, #tpu.memory_space<vmem>>, vector<1x1x128xf32>
    %152 = vector.shape_cast %151 : vector<1x1x128xf32> to vector<1x128xf32>
    %153 = vector.shape_cast %150 : vector<1x128xf32> to vector<1x1x128xf32>
    tpu.vector_store %arg15[%c0_173, %c0_174, %c0_175], %153 {strides = array<i32>} : memref<1x1x128xf32, #tpu.memory_space<vmem>>, vector<1x1x128xf32>,
    return
  }
  func.func @transform_0(%arg0: i32) -> (i32, i32, i32) {
    %c0_i32 = arith.constant 0 : i32
    %c0_i32_0 = arith.constant 0 : i32
    %c0_i32_1 = arith.constant 0 : i32
    return %arg0, %c0_i32, %c0_i32_0 : i32, i32, i32
  }
  func.func @transform_1(%arg0: i32) -> (i32, i32, i32) {
    %c0_i32 = arith.constant 0 : i32
    %c0_i32_0 = arith.constant 0 : i32
    %c0_i32_1 = arith.constant 0 : i32
    return %arg0, %c0_i32, %c0_i32_0 : i32, i32, i32
  }
  func.func @transform_2(%arg0: i32) -> (i32, i32) {
    %c0_i32 = arith.constant 0 : i32
    %c0_i32_0 = arith.constant 0 : i32
    %c0_i32_1 = arith.constant 0 : i32
    return %c0_i32, %c0_i32_0 : i32, i32
  }
  func.func @transform_3(%arg0: i32) -> (i32, i32) {
    %c0_i32 = arith.constant 0 : i32
    %c0_i32_0 = arith.constant 0 : i32
    %c0_i32_1 = arith.constant 0 : i32
    return %c0_i32, %c0_i32_0 : i32, i32
  }
  func.func @transform_4(%arg0: i32) -> (i32, i32) {
    %c0_i32 = arith.constant 0 : i32
    %c0_i32_0 = arith.constant 0 : i32
    %c0_i32_1 = arith.constant 0 : i32
    return %c0_i32, %c0_i32_0 : i32, i32
  }
  func.func @transform_5(%arg0: i32) -> (i32, i32) {
    %c0_i32 = arith.constant 0 : i32
    %c0_i32_0 = arith.constant 0 : i32
    %c0_i32_1 = arith.constant 0 : i32
    return %c0_i32, %c0_i32_0 : i32, i32
  }
  func.func @transform_6(%arg0: i32) -> (i32, i32) {
    %c0_i32 = arith.constant 0 : i32
    %c0_i32_0 = arith.constant 0 : i32
    %c0_i32_1 = arith.constant 0 : i32
    return %c0_i32, %c0_i32_0 : i32, i32
  }
  func.func @transform_7(%arg0: i32) -> (i32, i32) {
    %c0_i32 = arith.constant 0 : i32
    %c0_i32_0 = arith.constant 0 : i32
    %c0_i32_1 = arith.constant 0 : i32
    return %c0_i32, %c0_i32_0 : i32, i32
  }
  func.func @transform_8(%arg0: i32) -> (i32, i32) {
    %c0_i32 = arith.constant 0 : i32
    %c0_i32_0 = arith.constant 0 : i32
    %c0_i32_1 = arith.constant 0 : i32
    return %c0_i32, %c0_i32_0 : i32, i32
  }
  func.func @transform_9(%arg0: i32) -> (i32, i32) {
    %c0_i32 = arith.constant 0 : i32
    %c0_i32_0 = arith.constant 0 : i32
    %c0_i32_1 = arith.constant 0 : i32
    return %c0_i32, %c0_i32_0 : i32, i32
  }
  func.func @transform_10(%arg0: i32) -> (i32, i32) {
    %c0_i32 = arith.constant 0 : i32
    %c0_i32_0 = arith.constant 0 : i32
    %c0_i32_1 = arith.constant 0 : i32
    return %c0_i32, %c0_i32_0 : i32, i32
  }
  func.func @transform_11(%arg0: i32) -> (i32, i32) {
    %c0_i32 = arith.constant 0 : i32
    %c0_i32_0 = arith.constant 0 : i32
    %c0_i32_1 = arith.constant 0 : i32
    return %c0_i32, %c0_i32_0 : i32, i32
  }
  func.func @transform_12(%arg0: i32) -> (i32, i32) {
    %c0_i32 = arith.constant 0 : i32
    %c0_i32_0 = arith.constant 0 : i32
    %c0_i32_1 = arith.constant 0 : i32
    return %c0_i32, %c0_i32_0 : i32, i32
  }
  func.func @transform_13(%arg0: i32) -> (i32, i32) {
    %c0_i32 = arith.constant 0 : i32
    %c0_i32_0 = arith.constant 0 : i32
    %c0_i32_1 = arith.constant 0 : i32
    return %c0_i32, %c0_i32_0 : i32, i32
  }
  func.func @transform_14(%arg0: i32) -> (i32, i32, i32) {
    %c0_i32 = arith.constant 0 : i32
    %c0_i32_0 = arith.constant 0 : i32
    %c0_i32_1 = arith.constant 0 : i32
    return %arg0, %c0_i32, %c0_i32_0 : i32, i32, i32
  }
}

</mosaic_0001>

<llo_original>
// kernel: tpu_custom_call.1
$region0: #{tpu_custom_call.1}
  #allocation0 [shape = 'u32[]', space=smem, size = 0x4, offset = 0x4, fixed_abs, tag = 'smem constant byte address 0x4 - core index']
  #allocation1 [shape = 'u32[144,128]{1,0:T(1,128)}', space=vmem, size = 0x12000, scoped, tag = 'internal scratch']
  #allocation2 [shape = 'f32[16,134]{1,0:T(8,128)}', space=vmem, size = 0x4000, scoped, tag = 'scratch operand']
  #allocation3 [shape = 'f32[56,128]{1,0:T(8,128)}', space=vmem, size = 0x7000, scoped, tag = 'scratch operand']
  %s0 = inlined_call_operand.vmem [shape: f32[2,4,64], index: 0, kind: input, shape index: {}]
  %s1 = inlined_call_operand.vmem [shape: f32[2,8,1], index: 1, kind: input, shape index: {}]
  %s2 = inlined_call_operand.vmem [shape: f32[16,28], index: 2, kind: input, shape index: {}]
  %s3 = inlined_call_operand.vmem [shape: f32[16,1], index: 3, kind: input, shape index: {}]
  %s4 = inlined_call_operand.vmem [shape: f32[16,8], index: 4, kind: input, shape index: {}]
  %s5 = inlined_call_operand.vmem [shape: f32[16,1], index: 5, kind: input, shape index: {}]
  %s6 = inlined_call_operand.vmem [shape: f32[8,32], index: 6, kind: input, shape index: {}]
  %s7 = inlined_call_operand.vmem [shape: f32[8,32], index: 7, kind: input, shape index: {}]
  %s8 = inlined_call_operand.vmem [shape: f32[8,1], index: 8, kind: input, shape index: {}]
  %s9 = inlined_call_operand.vmem [shape: f32[8,24], index: 9, kind: input, shape index: {}]
  %s10 = inlined_call_operand.vmem [shape: f32[8,1], index: 10, kind: input, shape index: {}]
  %s11 = inlined_call_operand.vmem [shape: f32[8,24], index: 11, kind: input, shape index: {}]
  %s12 = inlined_call_operand.vmem [shape: f32[8,1], index: 12, kind: input, shape index: {}]
  %s13 = inlined_call_operand.vmem [shape: f32[1,56], index: 13, kind: input, shape index: {}]
  %s14 = inlined_call_operand.hbm [shape: f32[2,1,128], index: 14, kind: output, shape index: {}]
  %s15 = sld [smem:[#allocation0]]
  $region89: #{tpu_custom_call.1} parent=0
    _
  %s17 = ssub.s32 1, %s15
  %s18 = scalar_select 0, %s17, %s15
  $region1: #{tpu_custom_call.1} parent=0
    #allocation4 [shape = 'u8[1024]{0}', space=vmem, size = 0x400, scoped, tag = 'output window, operand 0']
    #allocation5 [shape = 's32[2]{0}', space=sflag, size = 0x8, scoped, tag = 'scoped memory for tpu_custom_call.1']
    %19 = vsyncpa [#allocation5], 0
    %s20 = scalar_lea.sflag [#allocation5], 1
    %21 = vsyncpa %s20, 0
    loop: start=0, step=1, limit=4
    $region2: #{tpu_custom_call.1} parent=1 // loop_pre_header
      _
    $region3: #{tpu_custom_call.1} parent=1 // loop_header
      %s23 = sphi 0, %s27
      %p24 = scmp.ge.s32.totalorder %s23, 4
      %s33 = sphi 0, %s35
      %s36 = sphi 0, %s33
      %s37 = sphi 0, %s36
      %s53 = sphi 0, %s37
      %s59 = sphi 0, %s61
      %s62 = sphi 0, %s59
      %s63 = sphi 0, %s62
      %s79 = sphi 0, %s63
      %s83 = sphi 0, %s83
      %s85 = sphi 0, %s83
      %s86 = sphi 0, %s85
      %s100 = sphi 0, %s86
      %s104 = sphi 0, %s104
      %s106 = sphi 0, %s104
      %s107 = sphi 0, %s106
      %s121 = sphi 0, %s107
      %s125 = sphi 0, %s125
      %s127 = sphi 0, %s125
      %s128 = sphi 0, %s127
      %s142 = sphi 0, %s128
      %s146 = sphi 0, %s146
      %s148 = sphi 0, %s146
      %s149 = sphi 0, %s148
      %s163 = sphi 0, %s149
      %s167 = sphi 0, %s167
      %s169 = sphi 0, %s167
      %s170 = sphi 0, %s169
      %s184 = sphi 0, %s170
      %s188 = sphi 0, %s188
      %s190 = sphi 0, %s188
      %s191 = sphi 0, %s190
      %s205 = sphi 0, %s191
      %s209 = sphi 0, %s209
      %s211 = sphi 0, %s209
      %s212 = sphi 0, %s211
      %s226 = sphi 0, %s212
      %s230 = sphi 0, %s230
      %s232 = sphi 0, %s230
      %s233 = sphi 0, %s232
      %s247 = sphi 0, %s233
      %s251 = sphi 0, %s251
      %s253 = sphi 0, %s251
      %s254 = sphi 0, %s253
      %s268 = sphi 0, %s254
      %s272 = sphi 0, %s272
      %s274 = sphi 0, %s272
      %s275 = sphi 0, %s274
      %s289 = sphi 0, %s275
      %s293 = sphi 0, %s293
      %s295 = sphi 0, %s293
      %s296 = sphi 0, %s295
      %s310 = sphi 0, %s296
      %s314 = sphi 0, %s314
      %s316 = sphi 0, %s314
      %s317 = sphi 0, %s316
      %s331 = sphi 0, %s317
      %s337 = sphi 0, %s339
      %s340 = sphi 0, %s337
      %s341 = sphi 0, %s340
      %s357 = sphi 0, %s341
    $region4: #{tpu_custom_call.1} parent=1 // loop_header_branch
      %26 = sbr.rel (%p24) target = $region8
    $region5: #{tpu_custom_call.1} parent=1 // loop_body
      %s28 = ssub.s32 %s23, 1
      %s29 = ssub.s32 %s23, 2
      %s30 = sadd.s32 %s23, 1
      %s31 = ssub.s32 %s23, %s30
      %p32 = scmp.eq.s32.totalorder %s31, 0
      %s34 = sadd.s32 %s33, 1
      %s35 = scalar_select %p32, %s33, %s34
      %p38 = pneg %p32
      %p39 = scmp.eq.s32.totalorder %s23, 1
      %p40 = por %p38, %p39
      %p41 = scmp.ne.s32.totalorder %s33, %s36
      %p42 = scmp.eq.s32.totalorder %s23, 0
      %p43 = por %p41, %p42
      %p44 = scmp.ne.s32.totalorder %s33, %s36
      %p45 = scmp.eq.s32.totalorder %s28, 1
      %p46 = por %p44, %p45
      %p47 = scmp.ne.s32.totalorder %s36, %s37
      %p48 = scmp.eq.s32.totalorder %s28, 0
      %p49 = por %p47, %p48
      %p50 = scmp.ne.s32.totalorder %s36, %s37
      %p51 = scmp.eq.s32.totalorder %s29, 1
      %p52 = por %p50, %p51
      %p54 = scmp.ne.s32.totalorder %s37, %s53
      %p55 = scmp.eq.s32.totalorder %s29, 0
      %p56 = por %p54, %p55
      %s57 = ssub.s32 %s23, %s30
      %p58 = scmp.eq.s32.totalorder %s57, 0
      %s60 = sadd.s32 %s59, 1
      %s61 = scalar_select %p58, %s59, %s60
      %p64 = pneg %p58
      %p65 = scmp.eq.s32.totalorder %s23, 1
      %p66 = por %p64, %p65
      %p67 = scmp.ne.s32.totalorder %s59, %s62
      %p68 = scmp.eq.s32.totalorder %s23, 0
      %p69 = por %p67, %p68
      %p70 = scmp.ne.s32.totalorder %s59, %s62
      %p71 = scmp.eq.s32.totalorder %s28, 1
      %p72 = por %p70, %p71
      %p73 = scmp.ne.s32.totalorder %s62, %s63
      %p74 = scmp.eq.s32.totalorder %s28, 0
      %p75 = por %p73, %p74
      %p76 = scmp.ne.s32.totalorder %s62, %s63
      %p77 = scmp.eq.s32.totalorder %s29, 1
      %p78 = por %p76, %p77
      %p80 = scmp.ne.s32.totalorder %s63, %s79
      %p81 = scmp.eq.s32.totalorder %s29, 0
      %p82 = por %p80, %p81
      %s84 = sadd.s32 %s83, 1
      %p87 = scmp.eq.s32.totalorder %s23, 1
      %p88 = scmp.ne.s32.totalorder %s83, %s85
      %p89 = scmp.eq.s32.totalorder %s23, 0
      %p90 = por %p88, %p89
      %p91 = scmp.ne.s32.totalorder %s83, %s85
      %p92 = scmp.eq.s32.totalorder %s28, 1
      %p93 = por %p91, %p92
      %p94 = scmp.ne.s32.totalorder %s85, %s86
      %p95 = scmp.eq.s32.totalorder %s28, 0
      %p96 = por %p94, %p95
      %p97 = scmp.ne.s32.totalorder %s85, %s86
      %p98 = scmp.eq.s32.totalorder %s29, 1
      %p99 = por %p97, %p98
      %p101 = scmp.ne.s32.totalorder %s86, %s100
      %p102 = scmp.eq.s32.totalorder %s29, 0
      %p103 = por %p101, %p102
      %s105 = sadd.s32 %s104, 1
      %p108 = scmp.eq.s32.totalorder %s23, 1
      %p109 = scmp.ne.s32.totalorder %s104, %s106
      %p110 = scmp.eq.s32.totalorder %s23, 0
      %p111 = por %p109, %p110
      %p112 = scmp.ne.s32.totalorder %s104, %s106
      %p113 = scmp.eq.s32.totalorder %s28, 1
      %p114 = por %p112, %p113
      %p115 = scmp.ne.s32.totalorder %s106, %s107
      %p116 = scmp.eq.s32.totalorder %s28, 0
      %p117 = por %p115, %p116
      %p118 = scmp.ne.s32.totalorder %s106, %s107
      %p119 = scmp.eq.s32.totalorder %s29, 1
      %p120 = por %p118, %p119
      %p122 = scmp.ne.s32.totalorder %s107, %s121
      %p123 = scmp.eq.s32.totalorder %s29, 0
      %p124 = por %p122, %p123
      %s126 = sadd.s32 %s125, 1
      %p129 = scmp.eq.s32.totalorder %s23, 1
      %p130 = scmp.ne.s32.totalorder %s125, %s127
      %p131 = scmp.eq.s32.totalorder %s23, 0
      %p132 = por %p130, %p131
      %p133 = scmp.ne.s32.totalorder %s125, %s127
      %p134 = scmp.eq.s32.totalorder %s28, 1
      %p135 = por %p133, %p134
      %p136 = scmp.ne.s32.totalorder %s127, %s128
      %p137 = scmp.eq.s32.totalorder %s28, 0
      %p138 = por %p136, %p137
      %p139 = scmp.ne.s32.totalorder %s127, %s128
      %p140 = scmp.eq.s32.totalorder %s29, 1
      %p141 = por %p139, %p140
      %p143 = scmp.ne.s32.totalorder %s128, %s142
      %p144 = scmp.eq.s32.totalorder %s29, 0
      %p145 = por %p143, %p144
      %s147 = sadd.s32 %s146, 1
      %p150 = scmp.eq.s32.totalorder %s23, 1
      %p151 = scmp.ne.s32.totalorder %s146, %s148
      %p152 = scmp.eq.s32.totalorder %s23, 0
      %p153 = por %p151, %p152
      %p154 = scmp.ne.s32.totalorder %s146, %s148
      %p155 = scmp.eq.s32.totalorder %s28, 1
      %p156 = por %p154, %p155
      %p157 = scmp.ne.s32.totalorder %s148, %s149
      %p158 = scmp.eq.s32.totalorder %s28, 0
      %p159 = por %p157, %p158
      %p160 = scmp.ne.s32.totalorder %s148, %s149
      %p161 = scmp.eq.s32.totalorder %s29, 1
      %p162 = por %p160, %p161
      %p164 = scmp.ne.s32.totalorder %s149, %s163
      %p165 = scmp.eq.s32.totalorder %s29, 0
      %p166 = por %p164, %p165
      %s168 = sadd.s32 %s167, 1
      %p171 = scmp.eq.s32.totalorder %s23, 1
      %p172 = scmp.ne.s32.totalorder %s167, %s169
      %p173 = scmp.eq.s32.totalorder %s23, 0
      %p174 = por %p172, %p173
      %p175 = scmp.ne.s32.totalorder %s167, %s169
      %p176 = scmp.eq.s32.totalorder %s28, 1
      %p177 = por %p175, %p176
      %p178 = scmp.ne.s32.totalorder %s169, %s170
      %p179 = scmp.eq.s32.totalorder %s28, 0
      %p180 = por %p178, %p179
      %p181 = scmp.ne.s32.totalorder %s169, %s170
      %p182 = scmp.eq.s32.totalorder %s29, 1
      %p183 = por %p181, %p182
      %p185 = scmp.ne.s32.totalorder %s170, %s184
      %p186 = scmp.eq.s32.totalorder %s29, 0
      %p187 = por %p185, %p186
      %s189 = sadd.s32 %s188, 1
      %p192 = scmp.eq.s32.totalorder %s23, 1
      %p193 = scmp.ne.s32.totalorder %s188, %s190
      %p194 = scmp.eq.s32.totalorder %s23, 0
      %p195 = por %p193, %p194
      %p196 = scmp.ne.s32.totalorder %s188, %s190
      %p197 = scmp.eq.s32.totalorder %s28, 1
      %p198 = por %p196, %p197
      %p199 = scmp.ne.s32.totalorder %s190, %s191
      %p200 = scmp.eq.s32.totalorder %s28, 0
      %p201 = por %p199, %p200
      %p202 = scmp.ne.s32.totalorder %s190, %s191
      %p203 = scmp.eq.s32.totalorder %s29, 1
      %p204 = por %p202, %p203
      %p206 = scmp.ne.s32.totalorder %s191, %s205
      %p207 = scmp.eq.s32.totalorder %s29, 0
      %p208 = por %p206, %p207
      %s210 = sadd.s32 %s209, 1
      %p213 = scmp.eq.s32.totalorder %s23, 1
      %p214 = scmp.ne.s32.totalorder %s209, %s211
      %p215 = scmp.eq.s32.totalorder %s23, 0
      %p216 = por %p214, %p215
      %p217 = scmp.ne.s32.totalorder %s209, %s211
      %p218 = scmp.eq.s32.totalorder %s28, 1
      %p219 = por %p217, %p218
      %p220 = scmp.ne.s32.totalorder %s211, %s212
      %p221 = scmp.eq.s32.totalorder %s28, 0
      %p222 = por %p220, %p221
      %p223 = scmp.ne.s32.totalorder %s211, %s212
      %p224 = scmp.eq.s32.totalorder %s29, 1
      %p225 = por %p223, %p224
      %p227 = scmp.ne.s32.totalorder %s212, %s226
      %p228 = scmp.eq.s32.totalorder %s29, 0
      %p229 = por %p227, %p228
      %s231 = sadd.s32 %s230, 1
      %p234 = scmp.eq.s32.totalorder %s23, 1
      %p235 = scmp.ne.s32.totalorder %s230, %s232
      %p236 = scmp.eq.s32.totalorder %s23, 0
      %p237 = por %p235, %p236
      %p238 = scmp.ne.s32.totalorder %s230, %s232
      %p239 = scmp.eq.s32.totalorder %s28, 1
      %p240 = por %p238, %p239
      %p241 = scmp.ne.s32.totalorder %s232, %s233
      %p242 = scmp.eq.s32.totalorder %s28, 0
      %p243 = por %p241, %p242
      %p244 = scmp.ne.s32.totalorder %s232, %s233
      %p245 = scmp.eq.s32.totalorder %s29, 1
      %p246 = por %p244, %p245
      %p248 = scmp.ne.s32.totalorder %s233, %s247
      %p249 = scmp.eq.s32.totalorder %s29, 0
      %p250 = por %p248, %p249
      %s252 = sadd.s32 %s251, 1
      %p255 = scmp.eq.s32.totalorder %s23, 1
      %p256 = scmp.ne.s32.totalorder %s251, %s253
      %p257 = scmp.eq.s32.totalorder %s23, 0
      %p258 = por %p256, %p257
      %p259 = scmp.ne.s32.totalorder %s251, %s253
      %p260 = scmp.eq.s32.totalorder %s28, 1
      %p261 = por %p259, %p260
      %p262 = scmp.ne.s32.totalorder %s253, %s254
      %p263 = scmp.eq.s32.totalorder %s28, 0
      %p264 = por %p262, %p263
      %p265 = scmp.ne.s32.totalorder %s253, %s254
      %p266 = scmp.eq.s32.totalorder %s29, 1
      %p267 = por %p265, %p266
      %p269 = scmp.ne.s32.totalorder %s254, %s268
      %p270 = scmp.eq.s32.totalorder %s29, 0
      %p271 = por %p269, %p270
      %s273 = sadd.s32 %s272, 1
      %p276 = scmp.eq.s32.totalorder %s23, 1
      %p277 = scmp.ne.s32.totalorder %s272, %s274
      %p278 = scmp.eq.s32.totalorder %s23, 0
      %p279 = por %p277, %p278
      %p280 = scmp.ne.s32.totalorder %s272, %s274
      %p281 = scmp.eq.s32.totalorder %s28, 1
      %p282 = por %p280, %p281
      %p283 = scmp.ne.s32.totalorder %s274, %s275
      %p284 = scmp.eq.s32.totalorder %s28, 0
      %p285 = por %p283, %p284
      %p286 = scmp.ne.s32.totalorder %s274, %s275
      %p287 = scmp.eq.s32.totalorder %s29, 1
      %p288 = por %p286, %p287
      %p290 = scmp.ne.s32.totalorder %s275, %s289
      %p291 = scmp.eq.s32.totalorder %s29, 0
      %p292 = por %p290, %p291
      %s294 = sadd.s32 %s293, 1
      %p297 = scmp.eq.s32.totalorder %s23, 1
      %p298 = scmp.ne.s32.totalorder %s293, %s295
      %p299 = scmp.eq.s32.totalorder %s23, 0
      %p300 = por %p298, %p299
      %p301 = scmp.ne.s32.totalorder %s293, %s295
      %p302 = scmp.eq.s32.totalorder %s28, 1
      %p303 = por %p301, %p302
      %p304 = scmp.ne.s32.totalorder %s295, %s296
      %p305 = scmp.eq.s32.totalorder %s28, 0
      %p306 = por %p304, %p305
      %p307 = scmp.ne.s32.totalorder %s295, %s296
      %p308 = scmp.eq.s32.totalorder %s29, 1
      %p309 = por %p307, %p308
      %p311 = scmp.ne.s32.totalorder %s296, %s310
      %p312 = scmp.eq.s32.totalorder %s29, 0
      %p313 = por %p311, %p312
      %s315 = sadd.s32 %s314, 1
      %p318 = scmp.eq.s32.totalorder %s23, 1
      %p319 = scmp.ne.s32.totalorder %s314, %s316
      %p320 = scmp.eq.s32.totalorder %s23, 0
      %p321 = por %p319, %p320
      %p322 = scmp.ne.s32.totalorder %s314, %s316
      %p323 = scmp.eq.s32.totalorder %s28, 1
      %p324 = por %p322, %p323
      %p325 = scmp.ne.s32.totalorder %s316, %s317
      %p326 = scmp.eq.s32.totalorder %s28, 0
      %p327 = por %p325, %p326
      %p328 = scmp.ne.s32.totalorder %s316, %s317
      %p329 = scmp.eq.s32.totalorder %s29, 1
      %p330 = por %p328, %p329
      %p332 = scmp.ne.s32.totalorder %s317, %s331
      %p333 = scmp.eq.s32.totalorder %s29, 0
      %p334 = por %p332, %p333
      %s335 = ssub.s32 %s23, %s30
      %p336 = scmp.eq.s32.totalorder %s335, 0
      %s338 = sadd.s32 %s337, 1
      %s339 = scalar_select %p336, %s337, %s338
      %p342 = pneg %p336
      %p343 = scmp.eq.s32.totalorder %s23, 1
      %p344 = por %p342, %p343
      %p345 = scmp.ne.s32.totalorder %s337, %s340
      %p346 = scmp.eq.s32.totalorder %s23, 0
      %p347 = por %p345, %p346
      %p348 = scmp.ne.s32.totalorder %s337, %s340
      %p349 = scmp.eq.s32.totalorder %s28, 1
      %p350 = por %p348, %p349
      %p351 = scmp.ne.s32.totalorder %s340, %s341
      %p352 = scmp.eq.s32.totalorder %s28, 0
      %p353 = por %p351, %p352
      %p354 = scmp.ne.s32.totalorder %s340, %s341
      %p355 = scmp.eq.s32.totalorder %s29, 1
      %p356 = por %p354, %p355
      %p358 = scmp.ne.s32.totalorder %s341, %s357
      %p359 = scmp.eq.s32.totalorder %s29, 0
      %p360 = por %p358, %p359
      %p361 = scmp.le.s32.totalorder 1, %s23
      %p362 = scmp.lt.s32.totalorder %s23, 3
      %p363 = pnand %p361, %p362
      %p364 = pneg %p363
      // Predicated region
      $region9: #{tpu_custom_call.1} parent=5 // pred_check
        _
      $region10: #{tpu_custom_call.1} parent=5 // pred_check_branch
        %366 = sbr.rel (%p363) target = $region12
      $region11: #{tpu_custom_call.1} parent=5 // pred_region
        %s367 = ssub.s32 %s23, 1
        // Predicated region
        $region13: #{tpu_custom_call.1} parent=11 // pred_check
          %p368 = pneg %p96
        $region14: #{tpu_custom_call.1} parent=11 // pred_check_branch
          %370 = sbr.rel (%p368) target = $region16
        $region15: #{tpu_custom_call.1} parent=11 // pred_region
          _
        $region16: #{tpu_custom_call.1} parent=11 // pred_fallthru
          _
        // Predicated region
        $region17: #{tpu_custom_call.1} parent=11 // pred_check
          %p371 = pneg %p117
        $region18: #{tpu_custom_call.1} parent=11 // pred_check_branch
          %373 = sbr.rel (%p371) target = $region20
        $region19: #{tpu_custom_call.1} parent=11 // pred_region
          _
        $region20: #{tpu_custom_call.1} parent=11 // pred_fallthru
          _
        // Predicated region
        $region21: #{tpu_custom_call.1} parent=11 // pred_check
          %p374 = pneg %p138
        $region22: #{tpu_custom_call.1} parent=11 // pred_check_branch
          %376 = sbr.rel (%p374) target = $region24
        $region23: #{tpu_custom_call.1} parent=11 // pred_region
          _
        $region24: #{tpu_custom_call.1} parent=11 // pred_fallthru
          _
        // Predicated region
        $region25: #{tpu_custom_call.1} parent=11 // pred_check
          %p377 = pneg %p159
        $region26: #{tpu_custom_call.1} parent=11 // pred_check_branch
          %379 = sbr.rel (%p377) target = $region28
        $region27: #{tpu_custom_call.1} parent=11 // pred_region
          _
        $region28: #{tpu_custom_call.1} parent=11 // pred_fallthru
          _
        // Predicated region
        $region29: #{tpu_custom_call.1} parent=11 // pred_check
          %p380 = pneg %p180
        $region30: #{tpu_custom_call.1} parent=11 // pred_check_branch
          %382 = sbr.rel (%p380) target = $region32
        $region31: #{tpu_custom_call.1} parent=11 // pred_region
          _
        $region32: #{tpu_custom_call.1} parent=11 // pred_fallthru
          _
        // Predicated region
        $region33: #{tpu_custom_call.1} parent=11 // pred_check
          %p383 = pneg %p201
        $region34: #{tpu_custom_call.1} parent=11 // pred_check_branch
          %385 = sbr.rel (%p383) target = $region36
        $region35: #{tpu_custom_call.1} parent=11 // pred_region
          _
        $region36: #{tpu_custom_call.1} parent=11 // pred_fallthru
          _
        // Predicated region
        $region37: #{tpu_custom_call.1} parent=11 // pred_check
          %p386 = pneg %p222
        $region38: #{tpu_custom_call.1} parent=11 // pred_check_branch
          %388 = sbr.rel (%p386) target = $region40
        $region39: #{tpu_custom_call.1} parent=11 // pred_region
          _
        $region40: #{tpu_custom_call.1} parent=11 // pred_fallthru
          _
        // Predicated region
        $region41: #{tpu_custom_call.1} parent=11 // pred_check
          %p389 = pneg %p243
        $region42: #{tpu_custom_call.1} parent=11 // pred_check_branch
          %391 = sbr.rel (%p389) target = $region44
        $region43: #{tpu_custom_call.1} parent=11 // pred_region
          _
        $region44: #{tpu_custom_call.1} parent=11 // pred_fallthru
          _
        // Predicated region
        $region45: #{tpu_custom_call.1} parent=11 // pred_check
          %p392 = pneg %p264
        $region46: #{tpu_custom_call.1} parent=11 // pred_check_branch
          %394 = sbr.rel (%p392) target = $region48
        $region47: #{tpu_custom_call.1} parent=11 // pred_region
          _
        $region48: #{tpu_custom_call.1} parent=11 // pred_fallthru
          _
        // Predicated region
        $region49: #{tpu_custom_call.1} parent=11 // pred_check
          %p395 = pneg %p285
        $region50: #{tpu_custom_call.1} parent=11 // pred_check_branch
          %397 = sbr.rel (%p395) target = $region52
        $region51: #{tpu_custom_call.1} parent=11 // pred_region
          _
        $region52: #{tpu_custom_call.1} parent=11 // pred_fallthru
          _
        // Predicated region
        $region53: #{tpu_custom_call.1} parent=11 // pred_check
          %p398 = pneg %p306
        $region54: #{tpu_custom_call.1} parent=11 // pred_check_branch
          %400 = sbr.rel (%p398) target = $region56
        $region55: #{tpu_custom_call.1} parent=11 // pred_region
          _
        $region56: #{tpu_custom_call.1} parent=11 // pred_fallthru
          _
        // Predicated region
        $region57: #{tpu_custom_call.1} parent=11 // pred_check
          %p401 = pneg %p327
        $region58: #{tpu_custom_call.1} parent=11 // pred_check_branch
          %403 = sbr.rel (%p401) target = $region60
        $region59: #{tpu_custom_call.1} parent=11 // pred_region
          _
        $region60: #{tpu_custom_call.1} parent=11 // pred_fallthru
          _
      $region12: #{tpu_custom_call.1} parent=5 // pred_fallthru
        _
      %p404 = scmp.lt.s32.totalorder %s23, 2
      // Predicated region
      $region61: #{tpu_custom_call.1} parent=5 // pred_check
        %p405 = pneg %p404
      $region62: #{tpu_custom_call.1} parent=5 // pred_check_branch
        %407 = sbr.rel (%p405) target = $region64
      $region63: #{tpu_custom_call.1} parent=5 // pred_region
        // Predicated region
        $region65: #{tpu_custom_call.1} parent=63 // pred_check
          %p408 = pneg %p43
        $region66: #{tpu_custom_call.1} parent=63 // pred_check_branch
          %410 = sbr.rel (%p408) target = $region68
        $region67: #{tpu_custom_call.1} parent=63 // pred_region
          %p411 = scmp.lt.s32.totalorder %s23, 1
          %s412 = scalar_select %p411, %s23, 1
          %s413 = smul.addr %s412, 4
          %s414 = scalar_lea.vmem %s0, %s413
        $region68: #{tpu_custom_call.1} parent=63 // pred_fallthru
          _
        // Predicated region
        $region69: #{tpu_custom_call.1} parent=63 // pred_check
          %p415 = pneg %p69
        $region70: #{tpu_custom_call.1} parent=63 // pred_check_branch
          %417 = sbr.rel (%p415) target = $region72
        $region71: #{tpu_custom_call.1} parent=63 // pred_region
          %p418 = scmp.lt.s32.totalorder %s23, 1
          %s419 = scalar_select %p418, %s23, 1
          %s420 = smul.addr %s419, 8
          %s421 = scalar_lea.vmem %s1, %s420
        $region72: #{tpu_custom_call.1} parent=63 // pred_fallthru
          _
      $region64: #{tpu_custom_call.1} parent=5 // pred_fallthru
        _
      %p422 = scmp.le.s32.totalorder 1, %s23
      %p423 = scmp.lt.s32.totalorder %s23, 3
      %p424 = pnand %p422, %p423
      %p425 = pneg %p424
      // Predicated region
      $region73: #{tpu_custom_call.1} parent=5 // pred_check
        _
      $region74: #{tpu_custom_call.1} parent=5 // pred_check_branch
        %427 = sbr.rel (%p424) target = $region76
      $region75: #{tpu_custom_call.1} parent=5 // pred_region
        %s428 = ssub.s32 %s23, 1
        %p429 = scmp.lt.s32.totalorder %s28, 1
        %s430 = scalar_select %p429, %s28, 1
        %s431 = smul.addr %s430, 4
        %s432 = scalar_lea.vmem %s0, %s431
        %p433 = pneg %p49
        %p434 = pneg %p46
        %p435 = scmp.lt.s32.totalorder %s28, 1
        %s436 = scalar_select %p435, %s28, 1
        %s437 = smul.addr %s436, 8
        %s438 = scalar_lea.vmem %s1, %s437
        %p439 = pneg %p75
        %p440 = pneg %p72
        %p441 = pneg %p96
        %p442 = pneg %p93
        %p443 = pneg %p117
        %p444 = pneg %p114
        %p445 = pneg %p138
        %p446 = pneg %p135
        %p447 = pneg %p159
        %p448 = pneg %p156
        %p449 = pneg %p180
        %p450 = pneg %p177
        %p451 = pneg %p201
        %p452 = pneg %p198
        %p453 = pneg %p222
        %p454 = pneg %p219
        %p455 = pneg %p243
        %p456 = pneg %p240
        %p457 = pneg %p264
        %p458 = pneg %p261
        %p459 = pneg %p285
        %p460 = pneg %p282
        %p461 = pneg %p306
        %p462 = pneg %p303
        %p463 = pneg %p327
        %p464 = pneg %p324
        %p465 = pneg %p353
        %p466 = pneg %p350
        %s467 = sand.u32 %s340, 1
        %s468 = scalar_lea.sflag [#allocation5], %s467
        %s469 = sand.u32 %s340, 1
        %s470 = scalar_lea.vmem [#allocation4], %s469
        %p471 = scmp.lt.s32.totalorder %s28, 1
        %s472 = scalar_select %p471, %s28, 1
        %s473 = smul.addr %s472, 4
        %s474 = scalar_lea.vmem %s0, %s473
        %p475 = scmp.lt.s32.totalorder %s28, 1
        %s476 = scalar_select %p475, %s28, 1
        %s477 = smul.addr %s476, 8
        %s478 = scalar_lea.vmem %s1, %s477
        %v479 = vld [vmem:[%s474] sm:$0xf]
        %v480 = vld [vmem:[%s478] sm:$0xff]
        %v481 = vld [vmem:[%s2] sm:$0xff]
        %v482 = vld [vmem:[%s2 + $0x8] sm:$0xff]
        %vm483 = vcmask 19456
        %484 = vst.msk [vmem:[#allocation2] sm:$0xf] %vm483, 0.0
        %vm485 = vcmask 568856
        %486 = vst.msk [vmem:[#allocation2] sm:$0xf] %vm485, 0.0
        %488 = vrot.lane.b32.xlu0 %v479, 3
        %v489 = vpop.permute.xlu0 %488
        %vm491 = vcmask 543768
        %492 = vst.msk [vmem:[#allocation2] sm:$0xf] %vm491, %v489
        %v493 = vld [vmem:[#allocation2] sm:$0xf]
        %vm494 = vcmask 519168
        %495 = vst.msk [vmem:[#allocation3] sm:$0xf] %vm494, %v493
        %v496 = vld [vmem:[#allocation2] sm:$0xf]
        %498 = vrot.lane.b32.xlu0 %v496, 127
        %v499 = vpop.permute.xlu0 %498
        %501 = vst.msk [vmem:[#allocation3 + $0x4] sm:$0xf] %vm494, %v499
        %v502 = vld [vmem:[#allocation2] sm:$0xf]
        %504 = vrot.lane.b32.xlu0 %v502, 126
        %v505 = vpop.permute.xlu0 %504
        %507 = vst.msk [vmem:[#allocation3 + $0x8] sm:$0xf] %vm494, %v505
        %v508 = vld [vmem:[#allocation2] sm:$0xf]
        %510 = vrot.lane.b32.xlu0 %v508, 125
        %v511 = vpop.permute.xlu0 %510
        %513 = vst.msk [vmem:[#allocation3 + $0xc] sm:$0xf] %vm494, %v511
        %v514 = vld [vmem:[#allocation2] sm:$0xf]
        %516 = vrot.lane.b32.xlu0 %v514, 124
        %v517 = vpop.permute.xlu0 %516
        %519 = vst.msk [vmem:[#allocation3 + $0x10] sm:$0xf] %vm494, %v517
        %v520 = vld [vmem:[#allocation2] sm:$0xf]
        %522 = vrot.lane.b32.xlu0 %v520, 123
        %v523 = vpop.permute.xlu0 %522
        %525 = vst.msk [vmem:[#allocation3 + $0x14] sm:$0xf] %vm494, %v523
        %v526 = vld [vmem:[#allocation2] sm:$0xf]
        %528 = vrot.lane.b32.xlu0 %v526, 122
        %v529 = vpop.permute.xlu0 %528
        %531 = vst.msk [vmem:[#allocation3 + $0x18] sm:$0xf] %vm494, %v529
        %v532 = vld [vmem:[#allocation3] sm:$0xff]
        %v533 = vld [vmem:[#allocation3 + $0x8] sm:$0xff]
        %v534 = vld [vmem:[#allocation3 + $0x10] sm:$0xff]
        %v535 = vld [vmem:[#allocation3 + $0x18] sm:$0xf]
        %v536 = vld [vmem:[%s3] sm:$0xff]
        %v537 = vld [vmem:[%s3 + $0x8] sm:$0xff]
        %539 = vset.pattern.permute.xlu0 0
        %540 = vperm.xlu0 %539, %v536
        %v541 = vpop.permute.xlu0 %540
        %544 = vset.pattern.permute.xlu0 0
        %545 = vperm.xlu0 %544, %v537
        %v546 = vpop.permute.xlu0 %545
        %vm548 = vcmask 228352
        %v550 = vsel %vm548, %v481, 0
        %v553 = vsel %vm548, %v482, 0
        %vm555 = vcmask 1043456
        %v557 = vsel %vm555, %v535, 0
        %559 = vmatprep.subr.mxu0 0.0
        %560 = vmatpush1.msra.mxu0 %v532
        %561 = vmatprep.subr.mxu0 0.0
        %562 = vmatpush1.msra.mxu0 %v533
        %563 = vmatprep.subr.mxu0 0.0
        %564 = vmatpush1.msra.mxu0 %v534
        %565 = vmatprep.subr.mxu0 0.0
        %566 = vmatpush1.msra.mxu0 %v557
        %567 = vmatprep.subr.mxu0 0.0
        %568 = vmatpush1.msra.mxu0 0.0
        %569 = vmatprep.subr.mxu0 0.0
        %570 = vmatpush1.msra.mxu0 0.0
        %571 = vmatprep.subr.mxu0 0.0
        %572 = vmatpush1.msra.mxu0 0.0
        %573 = vmatprep.subr.mxu0 0.0
        %574 = vmatpush1.msra.mxu0 0.0
        %575 = vmatprep.subr.mxu0 0.0
        %576 = vmatpush1.msra.mxu0 0.0
        %577 = vmatprep.subr.mxu0 0.0
        %578 = vmatpush1.msra.mxu0 0.0
        %579 = vmatprep.subr.mxu0 0.0
        %580 = vmatpush1.msra.mxu0 0.0
        %581 = vmatprep.subr.mxu0 0.0
        %582 = vmatpush1.msra.mxu0 0.0
        %583 = vmatprep.subr.mxu0 0.0
        %584 = vmatpush1.msra.mxu0 0.0
        %585 = vmatprep.subr.mxu0 0.0
        %586 = vmatpush1.msra.mxu0 0.0
        %587 = vmatprep.subr.mxu0 0.0
        %588 = vmatpush1.msra.mxu0 0.0
        %589 = vmatprep.subr.mxu0 0.0
        %590 = vmatpush1.msra.mxu0 0.0
        %591 = vmatprep.subr.mxu0 0.0
        %592 = vmatpush1.msra.mxu0 0.0
        %593 = vmatprep.subr.mxu0 0.0
        %594 = vmatpush1.msra.mxu0 0.0
        %595 = vmatprep.subr.mxu0 0.0
        %596 = vmatpush1.msra.mxu0 0.0
        %597 = vmatprep.subr.mxu0 0.0
        %598 = vmatpush1.msra.mxu0 0.0
        %599 = vmatprep.subr.mxu0 0.0
        %600 = vmatpush1.msra.mxu0 0.0
        %601 = vmatprep.subr.mxu0 0.0
        %602 = vmatpush1.msra.mxu0 0.0
        %603 = vmatprep.subr.mxu0 0.0
        %604 = vmatpush1.msra.mxu0 0.0
        %605 = vmatprep.subr.mxu0 0.0
        %606 = vmatpush1.msra.mxu0 0.0
        %607 = vmatprep.subr.mxu0 0.0
        %608 = vmatpush1.msra.mxu0 0.0
        %609 = vmatprep.subr.mxu0 0.0
        %610 = vmatpush1.msra.mxu0 0.0
        %611 = vmatprep.subr.mxu0 0.0
        %612 = vmatpush1.msra.mxu0 0.0
        %613 = vmatprep.subr.mxu0 0.0
        %614 = vmatpush1.msra.mxu0 0.0
        %615 = vmatprep.subr.mxu0 0.0
        %616 = vmatpush1.msra.mxu0 0.0
        %617 = vmatprep.subr.mxu0 0.0
        %618 = vmatpush1.msra.mxu0 0.0
        %619 = vmatprep.subr.mxu0 0.0
        %620 = vmatpush1.msra.mxu0 0.0
        %621 = vmatprep.subr.mxu0 0.0
        %622 = vmatpush1.msra.mxu0 0.0
        %623 = vmatprep.mubr.f32.mxu0 0.0
        %624 = vmatmul.mubr.f32.gmra.mrb[0].mxu0 %v550
        %v625 = vpop.f32.mrb[0].mxu0
        %v626 = vadd.f32 %v541, %v625
        %v627 = vpop.f32.mrb[0].mxu0
        %628 = vmatprep.mubr.f32.mxu0 0.0
        %629 = vmatmul.mubr.f32.gmra.mrb[0].mxu0 %v553
        %v630 = vpop.f32.mrb[0].mxu0
        %v631 = vadd.f32 %v546, %v630
        %v632 = vpop.f32.mrb[0].mxu0
        %633 = vdwg.mxu0
        %v634 = vld [vmem:[%s4] sm:$0xff]
        %v635 = vld [vmem:[%s4 + $0x8] sm:$0xff]
        %v636 = vld [vmem:[%s5] sm:$0xff]
        %v637 = vld [vmem:[%s5 + $0x8] sm:$0xff]
        %vm638 = vcmask 64512
        %v640 = vsel %vm638, %v634, 0
        %v643 = vsel %vm638, %v635, 0
        %645 = vmatprep.subr.mxu0 0.0
        %646 = vmatpush1.msra.mxu0 %v480
        %647 = vmatprep.subr.mxu0 0.0
        %648 = vmatpush1.msra.mxu0 0.0
        %649 = vmatprep.subr.mxu0 0.0
        %650 = vmatpush1.msra.mxu0 0.0
        %651 = vmatprep.subr.mxu0 0.0
        %652 = vmatpush1.msra.mxu0 0.0
        %653 = vmatprep.subr.mxu0 0.0
        %654 = vmatpush1.msra.mxu0 0.0
        %655 = vmatprep.subr.mxu0 0.0
        %656 = vmatpush1.msra.mxu0 0.0
        %657 = vmatprep.subr.mxu0 0.0
        %658 = vmatpush1.msra.mxu0 0.0
        %659 = vmatprep.subr.mxu0 0.0
        %660 = vmatpush1.msra.mxu0 0.0
        %661 = vmatprep.subr.mxu0 0.0
        %662 = vmatpush1.msra.mxu0 0.0
        %663 = vmatprep.subr.mxu0 0.0
        %664 = vmatpush1.msra.mxu0 0.0
        %665 = vmatprep.subr.mxu0 0.0
        %666 = vmatpush1.msra.mxu0 0.0
        %667 = vmatprep.subr.mxu0 0.0
        %668 = vmatpush1.msra.mxu0 0.0
        %669 = vmatprep.subr.mxu0 0.0
        %670 = vmatpush1.msra.mxu0 0.0
        %671 = vmatprep.subr.mxu0 0.0
        %672 = vmatpush1.msra.mxu0 0.0
        %673 = vmatprep.subr.mxu0 0.0
        %674 = vmatpush1.msra.mxu0 0.0
        %675 = vmatprep.subr.mxu0 0.0
        %676 = vmatpush1.msra.mxu0 0.0
        %677 = vmatprep.subr.mxu0 0.0
        %678 = vmatpush1.msra.mxu0 0.0
        %679 = vmatprep.subr.mxu0 0.0
        %680 = vmatpush1.msra.mxu0 0.0
        %681 = vmatprep.subr.mxu0 0.0
        %682 = vmatpush1.msra.mxu0 0.0
        %683 = vmatprep.subr.mxu0 0.0
        %684 = vmatpush1.msra.mxu0 0.0
        %685 = vmatprep.subr.mxu0 0.0
        %686 = vmatpush1.msra.mxu0 0.0
        %687 = vmatprep.subr.mxu0 0.0
        %688 = vmatpush1.msra.mxu0 0.0
        %689 = vmatprep.subr.mxu0 0.0
        %690 = vmatpush1.msra.mxu0 0.0
        %691 = vmatprep.subr.mxu0 0.0
        %692 = vmatpush1.msra.mxu0 0.0
        %693 = vmatprep.subr.mxu0 0.0
        %694 = vmatpush1.msra.mxu0 0.0
        %695 = vmatprep.subr.mxu0 0.0
        %696 = vmatpush1.msra.mxu0 0.0
        %697 = vmatprep.subr.mxu0 0.0
        %698 = vmatpush1.msra.mxu0 0.0
        %699 = vmatprep.subr.mxu0 0.0
        %700 = vmatpush1.msra.mxu0 0.0
        %701 = vmatprep.subr.mxu0 0.0
        %702 = vmatpush1.msra.mxu0 0.0
        %703 = vmatprep.subr.mxu0 0.0
        %704 = vmatpush1.msra.mxu0 0.0
        %705 = vmatprep.subr.mxu0 0.0
        %706 = vmatpush1.msra.mxu0 0.0
        %707 = vmatprep.subr.mxu0 0.0
        %708 = vmatpush1.msra.mxu0 0.0
        %709 = vmatprep.mubr.f32.mxu0 0.0
        %710 = vmatmul.mubr.f32.gmra.mrb[0].mxu0 %v640
        %v711 = vpop.f32.mrb[0].mxu0
        %v712 = vadd.f32 %v636, %v711
        %v713 = vpop.f32.mrb[0].mxu0
        %714 = vmatprep.mubr.f32.mxu0 0.0
        %715 = vmatmul.mubr.f32.gmra.mrb[0].mxu0 %v643
        %v716 = vpop.f32.mrb[0].mxu0
        %v717 = vadd.f32 %v637, %v716
        %v718 = vpop.f32.mrb[0].mxu0
        %719 = vdwg.mxu0
        %721 = vset.pattern.permute.xlu0 0
        %722 = vperm.xlu0 %721, %v712
        %v723 = vpop.permute.xlu0 %722
        %726 = vset.pattern.permute.xlu0 0
        %727 = vperm.xlu0 %726, %v717
        %v728 = vpop.permute.xlu0 %727
        %v730 = vadd.f32 %v626, %v723
        %v731 = vadd.f32 %v631, %v728
        %vm732 = vcmp.gt.f32.partialorder %v730, 0.0
        %vm733 = vcmp.gt.f32.partialorder %v731, 0.0
        %v734 = vmul.f32 %v730, 0.1
        %v735 = vmul.f32 %v731, 0.1
        %v736 = vsel %vm732, %v730, %v734
        %v737 = vsel %vm733, %v731, %v735
        %vm738 = vcmask 7168
        %739 = vst.msk [vmem:[#allocation2] sm:$0xff] %vm738, 0.0
        %740 = vst.msk [vmem:[#allocation2 + $0x10] sm:$0xff] %vm738, 0.0
        %vm741 = vcmask 540168
        %742 = vst.msk [vmem:[#allocation2] sm:$0xff] %vm741, 0.0
        %743 = vst.msk [vmem:[#allocation2 + $0x10] sm:$0xff] %vm741, 0.0
        %746 = vrot.lane.b32.xlu0 %v736, 1
        %v747 = vpop.permute.xlu0 %746
        %748 = vrot.lane.b32.xlu0 %v737, 1
        %v749 = vpop.permute.xlu0 %748
        %vm752 = vcmask 531464
        %753 = vst.msk [vmem:[#allocation2] sm:$0xff] %vm752, %v747
        %754 = vst.msk [vmem:[#allocation2 + $0x10] sm:$0xff] %vm752, %v749
        %v755 = vld [vmem:[#allocation2] sm:$0xff]
        %v756 = vld [vmem:[#allocation2 + $0x10] sm:$0xff]
        %vm757 = vcmask 523264
        %758 = vst.msk [vmem:[#allocation3] sm:$0xff] %vm757, %v755
        %759 = vst.msk [vmem:[#allocation3 + $0x8] sm:$0xff] %vm757, %v756
        %v760 = vld [vmem:[#allocation2] sm:$0xff]
        %v761 = vld [vmem:[#allocation2 + $0x10] sm:$0xff]
        %764 = vrot.lane.b32.xlu0 %v760, 127
        %v765 = vpop.permute.xlu0 %764
        %766 = vrot.lane.b32.xlu0 %v761, 127
        %v767 = vpop.permute.xlu0 %766
        %770 = vst.msk [vmem:[#allocation3 + $0x10] sm:$0xff] %vm757, %v765
        %771 = vst.msk [vmem:[#allocation3 + $0x18] sm:$0xff] %vm757, %v767
        %v772 = vld [vmem:[%s6] sm:$0xff]
        %v773 = vld [vmem:[#allocation3] sm:$0xff]
        %v774 = vld [vmem:[#allocation3 + $0x8] sm:$0xff]
        %v775 = vld [vmem:[#allocation3 + $0x10] sm:$0xff]
        %v776 = vld [vmem:[#allocation3 + $0x18] sm:$0xff]
        %v777 = vld [vmem:[%s8] sm:$0xff]
        %779 = vset.pattern.permute.xlu0 0
        %780 = vperm.xlu0 %779, %v777
        %v781 = vpop.permute.xlu0 %780
        %vm783 = vcmask 261120
        %v785 = vsel %vm783, %v772, 0
        %787 = vmatprep.subr.mxu0 0.0
        %788 = vmatpush1.msra.mxu0 %v773
        %789 = vmatprep.subr.mxu0 0.0
        %790 = vmatpush1.msra.mxu0 %v774
        %791 = vmatprep.subr.mxu0 0.0
        %792 = vmatpush1.msra.mxu0 %v775
        %793 = vmatprep.subr.mxu0 0.0
        %794 = vmatpush1.msra.mxu0 %v776
        %795 = vmatprep.subr.mxu0 0.0
        %796 = vmatpush1.msra.mxu0 0.0
        %797 = vmatprep.subr.mxu0 0.0
        %798 = vmatpush1.msra.mxu0 0.0
        %799 = vmatprep.subr.mxu0 0.0
        %800 = vmatpush1.msra.mxu0 0.0
        %801 = vmatprep.subr.mxu0 0.0
        %802 = vmatpush1.msra.mxu0 0.0
        %803 = vmatprep.subr.mxu0 0.0
        %804 = vmatpush1.msra.mxu0 0.0
        %805 = vmatprep.subr.mxu0 0.0
        %806 = vmatpush1.msra.mxu0 0.0
        %807 = vmatprep.subr.mxu0 0.0
        %808 = vmatpush1.msra.mxu0 0.0
        %809 = vmatprep.subr.mxu0 0.0
        %810 = vmatpush1.msra.mxu0 0.0
        %811 = vmatprep.subr.mxu0 0.0
        %812 = vmatpush1.msra.mxu0 0.0
        %813 = vmatprep.subr.mxu0 0.0
        %814 = vmatpush1.msra.mxu0 0.0
        %815 = vmatprep.subr.mxu0 0.0
        %816 = vmatpush1.msra.mxu0 0.0
        %817 = vmatprep.subr.mxu0 0.0
        %818 = vmatpush1.msra.mxu0 0.0
        %819 = vmatprep.subr.mxu0 0.0
        %820 = vmatpush1.msra.mxu0 0.0
        %821 = vmatprep.subr.mxu0 0.0
        %822 = vmatpush1.msra.mxu0 0.0
        %823 = vmatprep.subr.mxu0 0.0
        %824 = vmatpush1.msra.mxu0 0.0
        %825 = vmatprep.subr.mxu0 0.0
        %826 = vmatpush1.msra.mxu0 0.0
        %827 = vmatprep.subr.mxu0 0.0
        %828 = vmatpush1.msra.mxu0 0.0
        %829 = vmatprep.subr.mxu0 0.0
        %830 = vmatpush1.msra.mxu0 0.0
        %831 = vmatprep.subr.mxu0 0.0
        %832 = vmatpush1.msra.mxu0 0.0
        %833 = vmatprep.subr.mxu0 0.0
        %834 = vmatpush1.msra.mxu0 0.0
        %835 = vmatprep.subr.mxu0 0.0
        %836 = vmatpush1.msra.mxu0 0.0
        %837 = vmatprep.subr.mxu0 0.0
        %838 = vmatpush1.msra.mxu0 0.0
        %839 = vmatprep.subr.mxu0 0.0
        %840 = vmatpush1.msra.mxu0 0.0
        %841 = vmatprep.subr.mxu0 0.0
        %842 = vmatpush1.msra.mxu0 0.0
        %843 = vmatprep.subr.mxu0 0.0
        %844 = vmatpush1.msra.mxu0 0.0
        %845 = vmatprep.subr.mxu0 0.0
        %846 = vmatpush1.msra.mxu0 0.0
        %847 = vmatprep.subr.mxu0 0.0
        %848 = vmatpush1.msra.mxu0 0.0
        %849 = vmatprep.subr.mxu0 0.0
        %850 = vmatpush1.msra.mxu0 0.0
        %851 = vmatprep.mubr.f32.mxu0 0.0
        %852 = vmatmul.mubr.f32.gmra.mrb[0].mxu0 %v785
        %v853 = vpop.f32.mrb[0].mxu0
        %v854 = vadd.f32 %v781, %v853
        %v855 = vpop.f32.mrb[0].mxu0
        %856 = vdwg.mxu0
        %v857 = vld [vmem:[#allocation2] sm:$0xff]
        %v858 = vld [vmem:[#allocation2 + $0x10] sm:$0xff]
        %861 = vrot.lane.b32.xlu0 %v857, 127
        %v862 = vpop.permute.xlu0 %861
        %863 = vrot.lane.b32.xlu0 %v858, 127
        %v864 = vpop.permute.xlu0 %863
        %867 = vst.msk [vmem:[#allocation3] sm:$0xff] %vm757, %v862
        %868 = vst.msk [vmem:[#allocation3 + $0x8] sm:$0xff] %vm757, %v864
        %v869 = vld [vmem:[#allocation2] sm:$0xff]
        %v870 = vld [vmem:[#allocation2 + $0x10] sm:$0xff]
        %873 = vrot.lane.b32.xlu0 %v869, 126
        %v874 = vpop.permute.xlu0 %873
        %875 = vrot.lane.b32.xlu0 %v870, 126
        %v876 = vpop.permute.xlu0 %875
        %879 = vst.msk [vmem:[#allocation3 + $0x10] sm:$0xff] %vm757, %v874
        %880 = vst.msk [vmem:[#allocation3 + $0x18] sm:$0xff] %vm757, %v876
        %v881 = vld [vmem:[%s7] sm:$0xff]
        %v882 = vld [vmem:[#allocation3] sm:$0xff]
        %v883 = vld [vmem:[#allocation3 + $0x8] sm:$0xff]
        %v884 = vld [vmem:[#allocation3 + $0x10] sm:$0xff]
        %v885 = vld [vmem:[#allocation3 + $0x18] sm:$0xff]
        %v886 = vld [vmem:[%s8] sm:$0xff]
        %888 = vset.pattern.permute.xlu0 0
        %889 = vperm.xlu0 %888, %v886
        %v890 = vpop.permute.xlu0 %889
        %v893 = vsel %vm783, %v881, 0
        %895 = vmatprep.subr.mxu0 0.0
        %896 = vmatpush1.msra.mxu0 %v882
        %897 = vmatprep.subr.mxu0 0.0
        %898 = vmatpush1.msra.mxu0 %v883
        %899 = vmatprep.subr.mxu0 0.0
        %900 = vmatpush1.msra.mxu0 %v884
        %901 = vmatprep.subr.mxu0 0.0
        %902 = vmatpush1.msra.mxu0 %v885
        %903 = vmatprep.subr.mxu0 0.0
        %904 = vmatpush1.msra.mxu0 0.0
        %905 = vmatprep.subr.mxu0 0.0
        %906 = vmatpush1.msra.mxu0 0.0
        %907 = vmatprep.subr.mxu0 0.0
        %908 = vmatpush1.msra.mxu0 0.0
        %909 = vmatprep.subr.mxu0 0.0
        %910 = vmatpush1.msra.mxu0 0.0
        %911 = vmatprep.subr.mxu0 0.0
        %912 = vmatpush1.msra.mxu0 0.0
        %913 = vmatprep.subr.mxu0 0.0
        %914 = vmatpush1.msra.mxu0 0.0
        %915 = vmatprep.subr.mxu0 0.0
        %916 = vmatpush1.msra.mxu0 0.0
        %917 = vmatprep.subr.mxu0 0.0
        %918 = vmatpush1.msra.mxu0 0.0
        %919 = vmatprep.subr.mxu0 0.0
        %920 = vmatpush1.msra.mxu0 0.0
        %921 = vmatprep.subr.mxu0 0.0
        %922 = vmatpush1.msra.mxu0 0.0
        %923 = vmatprep.subr.mxu0 0.0
        %924 = vmatpush1.msra.mxu0 0.0
        %925 = vmatprep.subr.mxu0 0.0
        %926 = vmatpush1.msra.mxu0 0.0
        %927 = vmatprep.subr.mxu0 0.0
        %928 = vmatpush1.msra.mxu0 0.0
        %929 = vmatprep.subr.mxu0 0.0
        %930 = vmatpush1.msra.mxu0 0.0
        %931 = vmatprep.subr.mxu0 0.0
        %932 = vmatpush1.msra.mxu0 0.0
        %933 = vmatprep.subr.mxu0 0.0
        %934 = vmatpush1.msra.mxu0 0.0
        %935 = vmatprep.subr.mxu0 0.0
        %936 = vmatpush1.msra.mxu0 0.0
        %937 = vmatprep.subr.mxu0 0.0
        %938 = vmatpush1.msra.mxu0 0.0
        %939 = vmatprep.subr.mxu0 0.0
        %940 = vmatpush1.msra.mxu0 0.0
        %941 = vmatprep.subr.mxu0 0.0
        %942 = vmatpush1.msra.mxu0 0.0
        %943 = vmatprep.subr.mxu0 0.0
        %944 = vmatpush1.msra.mxu0 0.0
        %945 = vmatprep.subr.mxu0 0.0
        %946 = vmatpush1.msra.mxu0 0.0
        %947 = vmatprep.subr.mxu0 0.0
        %948 = vmatpush1.msra.mxu0 0.0
        %949 = vmatprep.subr.mxu0 0.0
        %950 = vmatpush1.msra.mxu0 0.0
        %951 = vmatprep.subr.mxu0 0.0
        %952 = vmatpush1.msra.mxu0 0.0
        %953 = vmatprep.subr.mxu0 0.0
        %954 = vmatpush1.msra.mxu0 0.0
        %955 = vmatprep.subr.mxu0 0.0
        %956 = vmatpush1.msra.mxu0 0.0
        %957 = vmatprep.subr.mxu0 0.0
        %958 = vmatpush1.msra.mxu0 0.0
        %959 = vmatprep.mubr.f32.mxu0 0.0
        %960 = vmatmul.mubr.f32.gmra.mrb[0].mxu0 %v893
        %v961 = vpop.f32.mrb[0].mxu0
        %v962 = vadd.f32 %v890, %v961
        %v963 = vpop.f32.mrb[0].mxu0
        %964 = vdwg.mxu0
        %v965 = vlaneseq
        %v966 = vshrl.u32 %v965, 7
        %v967 = vadd.s32 %v966, 8
        %v968 = vadd.s32 %v966, 16
        %v969 = vadd.s32 %v966, 24
        %v970 = vadd.s32 %v966, 32
        %v971 = vadd.s32 %v966, 40
        %v972 = vadd.s32 %v966, 48
        %v973 = vadd.s32 %v966, 56
        %v974 = vlaneseq
        %v975 = vand.u32 %v974, 127
        %v976 = vmul.u32 %v966, 2
        %v977 = vmul.u32 %v967, 2
        %v978 = vmul.u32 %v968, 2
        %v979 = vmul.u32 %v969, 2
        %v980 = vmul.u32 %v970, 2
        %v981 = vmul.u32 %v971, 2
        %v982 = vmul.u32 %v972, 2
        %v983 = vmul.u32 %v973, 2
        %vm984 = vcmp.eq.s32.totalorder %v975, %v976
        %vm985 = vcmp.eq.s32.totalorder %v975, %v977
        %vm986 = vcmp.eq.s32.totalorder %v975, %v978
        %vm987 = vcmp.eq.s32.totalorder %v975, %v979
        %vm988 = vcmp.eq.s32.totalorder %v975, %v980
        %vm989 = vcmp.eq.s32.totalorder %v975, %v981
        %vm990 = vcmp.eq.s32.totalorder %v975, %v982
        %vm991 = vcmp.eq.s32.totalorder %v975, %v983
        %v992 = vsel %vm984, 1, 0
        %v993 = vsel %vm985, 1, 0
        %v994 = vsel %vm986, 1, 0
        %v995 = vsel %vm987, 1, 0
        %v996 = vsel %vm988, 1, 0
        %v997 = vsel %vm989, 1, 0
        %v998 = vsel %vm990, 1, 0
        %v999 = vsel %vm991, 1, 0
        %v1000 = vcvt.s32.f32 %v992
        %v1001 = vcvt.s32.f32 %v993
        %v1002 = vcvt.s32.f32 %v994
        %v1003 = vcvt.s32.f32 %v995
        %v1004 = vcvt.s32.f32 %v996
        %v1005 = vcvt.s32.f32 %v997
        %v1006 = vcvt.s32.f32 %v998
        %v1007 = vcvt.s32.f32 %v999
        %v1008 = vadd.s32 %v976, 1
        %v1009 = vadd.s32 %v977, 1
        %v1010 = vadd.s32 %v978, 1
        %v1011 = vadd.s32 %v979, 1
        %v1012 = vadd.s32 %v980, 1
        %v1013 = vadd.s32 %v981, 1
        %v1014 = vadd.s32 %v982, 1
        %v1015 = vadd.s32 %v983, 1
        %vm1016 = vcmp.eq.s32.totalorder %v975, %v1008
        %vm1017 = vcmp.eq.s32.totalorder %v975, %v1009
        %vm1018 = vcmp.eq.s32.totalorder %v975, %v1010
        %vm1019 = vcmp.eq.s32.totalorder %v975, %v1011
        %vm1020 = vcmp.eq.s32.totalorder %v975, %v1012
        %vm1021 = vcmp.eq.s32.totalorder %v975, %v1013
        %vm1022 = vcmp.eq.s32.totalorder %v975, %v1014
        %vm1023 = vcmp.eq.s32.totalorder %v975, %v1015
        %v1024 = vsel %vm1016, 1, 0
        %v1025 = vsel %vm1017, 1, 0
        %v1026 = vsel %vm1018, 1, 0
        %v1027 = vsel %vm1019, 1, 0
        %v1028 = vsel %vm1020, 1, 0
        %v1029 = vsel %vm1021, 1, 0
        %v1030 = vsel %vm1022, 1, 0
        %v1031 = vsel %vm1023, 1, 0
        %v1032 = vcvt.s32.f32 %v1024
        %v1033 = vcvt.s32.f32 %v1025
        %v1034 = vcvt.s32.f32 %v1026
        %v1035 = vcvt.s32.f32 %v1027
        %v1036 = vcvt.s32.f32 %v1028
        %v1037 = vcvt.s32.f32 %v1029
        %v1038 = vcvt.s32.f32 %v1030
        %v1039 = vcvt.s32.f32 %v1031
        %v1041 = vsel %vm757, %v962, 0
        %1043 = vmatprep.subr.mxu0 0.0
        %1044 = vmatpush1.msra.mxu0 %v1032
        %1045 = vmatprep.subr.mxu0 0.0
        %1046 = vmatpush1.msra.mxu0 %v1033
        %1047 = vmatprep.subr.mxu0 0.0
        %1048 = vmatpush1.msra.mxu0 %v1034
        %1049 = vmatprep.subr.mxu0 0.0
        %1050 = vmatpush1.msra.mxu0 %v1035
        %1051 = vmatprep.subr.mxu0 0.0
        %1052 = vmatpush1.msra.mxu0 %v1036
        %1053 = vmatprep.subr.mxu0 0.0
        %1054 = vmatpush1.msra.mxu0 %v1037
        %1055 = vmatprep.subr.mxu0 0.0
        %1056 = vmatpush1.msra.mxu0 %v1038
        %1057 = vmatprep.subr.mxu0 0.0
        %1058 = vmatpush1.msra.mxu0 %v1039
        %1059 = vmatprep.subr.mxu0 0.0
        %1060 = vmatpush1.msra.mxu0 0.0
        %1061 = vmatprep.subr.mxu0 0.0
        %1062 = vmatpush1.msra.mxu0 0.0
        %1063 = vmatprep.subr.mxu0 0.0
        %1064 = vmatpush1.msra.mxu0 0.0
        %1065 = vmatprep.subr.mxu0 0.0
        %1066 = vmatpush1.msra.mxu0 0.0
        %1067 = vmatprep.subr.mxu0 0.0
        %1068 = vmatpush1.msra.mxu0 0.0
        %1069 = vmatprep.subr.mxu0 0.0
        %1070 = vmatpush1.msra.mxu0 0.0
        %1071 = vmatprep.subr.mxu0 0.0
        %1072 = vmatpush1.msra.mxu0 0.0
        %1073 = vmatprep.subr.mxu0 0.0
        %1074 = vmatpush1.msra.mxu0 0.0
        %1075 = vmatprep.subr.mxu0 0.0
        %1076 = vmatpush1.msra.mxu0 0.0
        %1077 = vmatprep.subr.mxu0 0.0
        %1078 = vmatpush1.msra.mxu0 0.0
        %1079 = vmatprep.subr.mxu0 0.0
        %1080 = vmatpush1.msra.mxu0 0.0
        %1081 = vmatprep.subr.mxu0 0.0
        %1082 = vmatpush1.msra.mxu0 0.0
        %1083 = vmatprep.subr.mxu0 0.0
        %1084 = vmatpush1.msra.mxu0 0.0
        %1085 = vmatprep.subr.mxu0 0.0
        %1086 = vmatpush1.msra.mxu0 0.0
        %1087 = vmatprep.subr.mxu0 0.0
        %1088 = vmatpush1.msra.mxu0 0.0
        %1089 = vmatprep.subr.mxu0 0.0
        %1090 = vmatpush1.msra.mxu0 0.0
        %1091 = vmatprep.subr.mxu0 0.0
        %1092 = vmatpush1.msra.mxu0 0.0
        %1093 = vmatprep.subr.mxu0 0.0
        %1094 = vmatpush1.msra.mxu0 0.0
        %1095 = vmatprep.subr.mxu0 0.0
        %1096 = vmatpush1.msra.mxu0 0.0
        %1097 = vmatprep.subr.mxu0 0.0
        %1098 = vmatpush1.msra.mxu0 0.0
        %1099 = vmatprep.subr.mxu0 0.0
        %1100 = vmatpush1.msra.mxu0 0.0
        %1101 = vmatprep.subr.mxu0 0.0
        %1102 = vmatpush1.msra.mxu0 0.0
        %1103 = vmatprep.subr.mxu0 0.0
        %1104 = vmatpush1.msra.mxu0 0.0
        %1105 = vmatprep.subr.mxu0 0.0
        %1106 = vmatpush1.msra.mxu0 0.0
        %1107 = vmatprep.mubr.f32.mxu0 0.0
        %1108 = vmatmul.mubr.f32.gmra.mrb[0].mxu0 %v1041
        %v1109 = vpop.f32.mrb[0].mxu0
        %v1110 = vadd.f32 0.0, %v1109
        %v1111 = vpop.f32.mrb[0].mxu0
        %1112 = vdwg.mxu0
        %v1114 = vsel %vm757, %v854, 0
        %1116 = vmatprep.subr.mxu0 0.0
        %1117 = vmatpush1.msra.mxu0 %v1000
        %1118 = vmatprep.subr.mxu0 0.0
        %1119 = vmatpush1.msra.mxu0 %v1001
        %1120 = vmatprep.subr.mxu0 0.0
        %1121 = vmatpush1.msra.mxu0 %v1002
        %1122 = vmatprep.subr.mxu0 0.0
        %1123 = vmatpush1.msra.mxu0 %v1003
        %1124 = vmatprep.subr.mxu0 0.0
        %1125 = vmatpush1.msra.mxu0 %v1004
        %1126 = vmatprep.subr.mxu0 0.0
        %1127 = vmatpush1.msra.mxu0 %v1005
        %1128 = vmatprep.subr.mxu0 0.0
        %1129 = vmatpush1.msra.mxu0 %v1006
        %1130 = vmatprep.subr.mxu0 0.0
        %1131 = vmatpush1.msra.mxu0 %v1007
        %1132 = vmatprep.subr.mxu0 0.0
        %1133 = vmatpush1.msra.mxu0 0.0
        %1134 = vmatprep.subr.mxu0 0.0
        %1135 = vmatpush1.msra.mxu0 0.0
        %1136 = vmatprep.subr.mxu0 0.0
        %1137 = vmatpush1.msra.mxu0 0.0
        %1138 = vmatprep.subr.mxu0 0.0
        %1139 = vmatpush1.msra.mxu0 0.0
        %1140 = vmatprep.subr.mxu0 0.0
        %1141 = vmatpush1.msra.mxu0 0.0
        %1142 = vmatprep.subr.mxu0 0.0
        %1143 = vmatpush1.msra.mxu0 0.0
        %1144 = vmatprep.subr.mxu0 0.0
        %1145 = vmatpush1.msra.mxu0 0.0
        %1146 = vmatprep.subr.mxu0 0.0
        %1147 = vmatpush1.msra.mxu0 0.0
        %1148 = vmatprep.subr.mxu0 0.0
        %1149 = vmatpush1.msra.mxu0 0.0
        %1150 = vmatprep.subr.mxu0 0.0
        %1151 = vmatpush1.msra.mxu0 0.0
        %1152 = vmatprep.subr.mxu0 0.0
        %1153 = vmatpush1.msra.mxu0 0.0
        %1154 = vmatprep.subr.mxu0 0.0
        %1155 = vmatpush1.msra.mxu0 0.0
        %1156 = vmatprep.subr.mxu0 0.0
        %1157 = vmatpush1.msra.mxu0 0.0
        %1158 = vmatprep.subr.mxu0 0.0
        %1159 = vmatpush1.msra.mxu0 0.0
        %1160 = vmatprep.subr.mxu0 0.0
        %1161 = vmatpush1.msra.mxu0 0.0
        %1162 = vmatprep.subr.mxu0 0.0
        %1163 = vmatpush1.msra.mxu0 0.0
        %1164 = vmatprep.subr.mxu0 0.0
        %1165 = vmatpush1.msra.mxu0 0.0
        %1166 = vmatprep.subr.mxu0 0.0
        %1167 = vmatpush1.msra.mxu0 0.0
        %1168 = vmatprep.subr.mxu0 0.0
        %1169 = vmatpush1.msra.mxu0 0.0
        %1170 = vmatprep.subr.mxu0 0.0
        %1171 = vmatpush1.msra.mxu0 0.0
        %1172 = vmatprep.subr.mxu0 0.0
        %1173 = vmatpush1.msra.mxu0 0.0
        %1174 = vmatprep.subr.mxu0 0.0
        %1175 = vmatpush1.msra.mxu0 0.0
        %1176 = vmatprep.subr.mxu0 0.0
        %1177 = vmatpush1.msra.mxu0 0.0
        %1178 = vmatprep.subr.mxu0 0.0
        %1179 = vmatpush1.msra.mxu0 0.0
        %1180 = vmatprep.mubr.f32.mxu0 0.0
        %1181 = vmatmul.mubr.f32.gmra.mrb[0].mxu0 %v1114
        %v1182 = vpop.f32.mrb[0].mxu0
        %v1183 = vadd.f32 %v1110, %v1182
        %v1184 = vpop.f32.mrb[0].mxu0
        %1185 = vdwg.mxu0
        %vm1186 = vcmp.gt.f32.partialorder %v1183, 0.0
        %v1187 = vmul.f32 %v1183, 0.1
        %v1188 = vsel %vm1186, %v1183, %v1187
        %v1189 = vld [vmem:[%s9] sm:$0xff]
        %1190 = vst.msk [vmem:[#allocation2] sm:$0xff] %vm738, 0.0
        %vm1191 = vcmask 15368
        %1192 = vst.msk [vmem:[#allocation2 + $0x8] sm:$0xff] %vm1191, 0.0
        %1194 = vrot.lane.b32.xlu0 %v1188, 1
        %v1195 = vpop.permute.xlu0 %1194
        %vm1197 = vcmask 1047560
        %1198 = vst.msk [vmem:[#allocation2] sm:$0xff] %vm1197, %v1195
        %1199 = vst.msk [vmem:[#allocation2 + $0x8] sm:$0xff] %vm738, %v1195
        %v1200 = vld [vmem:[#allocation2] sm:$0xff]
        %1201 = vst [vmem:[#allocation3] sm:$0xff] %v1200
        %v1202 = vld [vmem:[#allocation2] sm:$0xff]
        %v1203 = vld [vmem:[#allocation2 + $0x8] sm:$0xff]
        %1206 = vrot.lane.b32.xlu0 %v1202, 127
        %v1207 = vpop.permute.xlu0 %1206
        %1208 = vrot.lane.b32.xlu0 %v1203, 127
        %v1209 = vpop.permute.xlu0 %1208
        %vm1210 = vcmask 1039360
        %v1211 = vsel %vm1210, %v1207, %v1209
        %1213 = vst [vmem:[#allocation3 + $0x8] sm:$0xff] %v1211
        %v1214 = vld [vmem:[#allocation2] sm:$0xff]
        %v1215 = vld [vmem:[#allocation2 + $0x8] sm:$0xff]
        %1218 = vrot.lane.b32.xlu0 %v1214, 126
        %v1219 = vpop.permute.xlu0 %1218
        %1220 = vrot.lane.b32.xlu0 %v1215, 126
        %v1221 = vpop.permute.xlu0 %1220
        %vm1222 = vcmask 1031168
        %v1223 = vsel %vm1222, %v1219, %v1221
        %1225 = vst [vmem:[#allocation3 + $0x10] sm:$0xff] %v1223
        %v1226 = vld [vmem:[#allocation3] sm:$0xff]
        %v1227 = vld [vmem:[#allocation3 + $0x8] sm:$0xff]
        %v1228 = vld [vmem:[#allocation3 + $0x10] sm:$0xff]
        %v1229 = vld [vmem:[%s10] sm:$0xff]
        %1231 = vset.pattern.permute.xlu0 0
        %1232 = vperm.xlu0 %1231, %v1229
        %v1233 = vpop.permute.xlu0 %1232
        %vm1235 = vcmask 195584
        %v1237 = vsel %vm1235, %v1189, 0
        %1239 = vmatprep.subr.mxu0 0.0
        %1240 = vmatpush1.msra.mxu0 %v1226
        %1241 = vmatprep.subr.mxu0 0.0
        %1242 = vmatpush1.msra.mxu0 %v1227
        %1243 = vmatprep.subr.mxu0 0.0
        %1244 = vmatpush1.msra.mxu0 %v1228
        %1245 = vmatprep.subr.mxu0 0.0
        %1246 = vmatpush1.msra.mxu0 0.0
        %1247 = vmatprep.subr.mxu0 0.0
        %1248 = vmatpush1.msra.mxu0 0.0
        %1249 = vmatprep.subr.mxu0 0.0
        %1250 = vmatpush1.msra.mxu0 0.0
        %1251 = vmatprep.subr.mxu0 0.0
        %1252 = vmatpush1.msra.mxu0 0.0
        %1253 = vmatprep.subr.mxu0 0.0
        %1254 = vmatpush1.msra.mxu0 0.0
        %1255 = vmatprep.subr.mxu0 0.0
        %1256 = vmatpush1.msra.mxu0 0.0
        %1257 = vmatprep.subr.mxu0 0.0
        %1258 = vmatpush1.msra.mxu0 0.0
        %1259 = vmatprep.subr.mxu0 0.0
        %1260 = vmatpush1.msra.mxu0 0.0
        %1261 = vmatprep.subr.mxu0 0.0
        %1262 = vmatpush1.msra.mxu0 0.0
        %1263 = vmatprep.subr.mxu0 0.0
        %1264 = vmatpush1.msra.mxu0 0.0
        %1265 = vmatprep.subr.mxu0 0.0
        %1266 = vmatpush1.msra.mxu0 0.0
        %1267 = vmatprep.subr.mxu0 0.0
        %1268 = vmatpush1.msra.mxu0 0.0
        %1269 = vmatprep.subr.mxu0 0.0
        %1270 = vmatpush1.msra.mxu0 0.0
        %1271 = vmatprep.subr.mxu0 0.0
        %1272 = vmatpush1.msra.mxu0 0.0
        %1273 = vmatprep.subr.mxu0 0.0
        %1274 = vmatpush1.msra.mxu0 0.0
        %1275 = vmatprep.subr.mxu0 0.0
        %1276 = vmatpush1.msra.mxu0 0.0
        %1277 = vmatprep.subr.mxu0 0.0
        %1278 = vmatpush1.msra.mxu0 0.0
        %1279 = vmatprep.subr.mxu0 0.0
        %1280 = vmatpush1.msra.mxu0 0.0
        %1281 = vmatprep.subr.mxu0 0.0
        %1282 = vmatpush1.msra.mxu0 0.0
        %1283 = vmatprep.subr.mxu0 0.0
        %1284 = vmatpush1.msra.mxu0 0.0
        %1285 = vmatprep.subr.mxu0 0.0
        %1286 = vmatpush1.msra.mxu0 0.0
        %1287 = vmatprep.subr.mxu0 0.0
        %1288 = vmatpush1.msra.mxu0 0.0
        %1289 = vmatprep.subr.mxu0 0.0
        %1290 = vmatpush1.msra.mxu0 0.0
        %1291 = vmatprep.subr.mxu0 0.0
        %1292 = vmatpush1.msra.mxu0 0.0
        %1293 = vmatprep.subr.mxu0 0.0
        %1294 = vmatpush1.msra.mxu0 0.0
        %1295 = vmatprep.subr.mxu0 0.0
        %1296 = vmatpush1.msra.mxu0 0.0
        %1297 = vmatprep.subr.mxu0 0.0
        %1298 = vmatpush1.msra.mxu0 0.0
        %1299 = vmatprep.subr.mxu0 0.0
        %1300 = vmatpush1.msra.mxu0 0.0
        %1301 = vmatprep.subr.mxu0 0.0
        %1302 = vmatpush1.msra.mxu0 0.0
        %1303 = vmatprep.mubr.f32.mxu0 0.0
        %1304 = vmatmul.mubr.f32.gmra.mrb[0].mxu0 %v1237
        %v1305 = vpop.f32.mrb[0].mxu0
        %v1306 = vadd.f32 %v1233, %v1305
        %v1307 = vpop.f32.mrb[0].mxu0
        %1308 = vdwg.mxu0
        %v1309 = vadd.f32 %v1183, %v1306
        %vm1310 = vcmp.gt.f32.partialorder %v1309, 0.0
        %v1311 = vmul.f32 %v1309, 0.1
        %v1312 = vsel %vm1310, %v1309, %v1311
        %v1313 = vld [vmem:[%s11] sm:$0xff]
        %vm1314 = vcmask 23552
        %1315 = vst.msk [vmem:[#allocation2] sm:$0xff] %vm1314, 0.0
        %vm1316 = vcmask 48152
        %1317 = vst.msk [vmem:[#allocation2 + $0x8] sm:$0xff] %vm1316, 0.0
        %1319 = vrot.lane.b32.xlu0 %v1312, 3
        %v1320 = vpop.permute.xlu0 %1319
        %vm1322 = vcmask 1047576
        %1323 = vst.msk [vmem:[#allocation2] sm:$0xff] %vm1322, %v1320
        %1324 = vst.msk [vmem:[#allocation2 + $0x8] sm:$0xff] %vm1314, %v1320
        %v1325 = vld [vmem:[#allocation2] sm:$0xff]
        %1326 = vst [vmem:[#allocation3] sm:$0xff] %v1325
        %v1327 = vld [vmem:[#allocation2] sm:$0xff]
        %v1328 = vld [vmem:[#allocation2 + $0x8] sm:$0xff]
        %1331 = vrot.lane.b32.xlu0 %v1327, 125
        %v1332 = vpop.permute.xlu0 %1331
        %1333 = vrot.lane.b32.xlu0 %v1328, 125
        %v1334 = vpop.permute.xlu0 %1333
        %vm1335 = vcmask 1022976
        %v1336 = vsel %vm1335, %v1332, %v1334
        %1338 = vst [vmem:[#allocation3 + $0x8] sm:$0xff] %v1336
        %v1339 = vld [vmem:[#allocation2] sm:$0xff]
        %v1340 = vld [vmem:[#allocation2 + $0x8] sm:$0xff]
        %1343 = vrot.lane.b32.xlu0 %v1339, 122
        %v1344 = vpop.permute.xlu0 %1343
        %1345 = vrot.lane.b32.xlu0 %v1340, 122
        %v1346 = vpop.permute.xlu0 %1345
        %vm1347 = vcmask 998400
        %v1348 = vsel %vm1347, %v1344, %v1346
        %1350 = vst [vmem:[#allocation3 + $0x10] sm:$0xff] %v1348
        %v1351 = vld [vmem:[#allocation3] sm:$0xff]
        %v1352 = vld [vmem:[#allocation3 + $0x8] sm:$0xff]
        %v1353 = vld [vmem:[#allocation3 + $0x10] sm:$0xff]
        %v1354 = vld [vmem:[%s12] sm:$0xff]
        %1356 = vset.pattern.permute.xlu0 0
        %1357 = vperm.xlu0 %1356, %v1354
        %v1358 = vpop.permute.xlu0 %1357
        %v1361 = vsel %vm1235, %v1313, 0
        %1363 = vmatprep.subr.mxu0 0.0
        %1364 = vmatpush1.msra.mxu0 %v1351
        %1365 = vmatprep.subr.mxu0 0.0
        %1366 = vmatpush1.msra.mxu0 %v1352
        %1367 = vmatprep.subr.mxu0 0.0
        %1368 = vmatpush1.msra.mxu0 %v1353
        %1369 = vmatprep.subr.mxu0 0.0
        %1370 = vmatpush1.msra.mxu0 0.0
        %1371 = vmatprep.subr.mxu0 0.0
        %1372 = vmatpush1.msra.mxu0 0.0
        %1373 = vmatprep.subr.mxu0 0.0
        %1374 = vmatpush1.msra.mxu0 0.0
        %1375 = vmatprep.subr.mxu0 0.0
        %1376 = vmatpush1.msra.mxu0 0.0
        %1377 = vmatprep.subr.mxu0 0.0
        %1378 = vmatpush1.msra.mxu0 0.0
        %1379 = vmatprep.subr.mxu0 0.0
        %1380 = vmatpush1.msra.mxu0 0.0
        %1381 = vmatprep.subr.mxu0 0.0
        %1382 = vmatpush1.msra.mxu0 0.0
        %1383 = vmatprep.subr.mxu0 0.0
        %1384 = vmatpush1.msra.mxu0 0.0
        %1385 = vmatprep.subr.mxu0 0.0
        %1386 = vmatpush1.msra.mxu0 0.0
        %1387 = vmatprep.subr.mxu0 0.0
        %1388 = vmatpush1.msra.mxu0 0.0
        %1389 = vmatprep.subr.mxu0 0.0
        %1390 = vmatpush1.msra.mxu0 0.0
        %1391 = vmatprep.subr.mxu0 0.0
        %1392 = vmatpush1.msra.mxu0 0.0
        %1393 = vmatprep.subr.mxu0 0.0
        %1394 = vmatpush1.msra.mxu0 0.0
        %1395 = vmatprep.subr.mxu0 0.0
        %1396 = vmatpush1.msra.mxu0 0.0
        %1397 = vmatprep.subr.mxu0 0.0
        %1398 = vmatpush1.msra.mxu0 0.0
        %1399 = vmatprep.subr.mxu0 0.0
        %1400 = vmatpush1.msra.mxu0 0.0
        %1401 = vmatprep.subr.mxu0 0.0
        %1402 = vmatpush1.msra.mxu0 0.0
        %1403 = vmatprep.subr.mxu0 0.0
        %1404 = vmatpush1.msra.mxu0 0.0
        %1405 = vmatprep.subr.mxu0 0.0
        %1406 = vmatpush1.msra.mxu0 0.0
        %1407 = vmatprep.subr.mxu0 0.0
        %1408 = vmatpush1.msra.mxu0 0.0
        %1409 = vmatprep.subr.mxu0 0.0
        %1410 = vmatpush1.msra.mxu0 0.0
        %1411 = vmatprep.subr.mxu0 0.0
        %1412 = vmatpush1.msra.mxu0 0.0
        %1413 = vmatprep.subr.mxu0 0.0
        %1414 = vmatpush1.msra.mxu0 0.0
        %1415 = vmatprep.subr.mxu0 0.0
        %1416 = vmatpush1.msra.mxu0 0.0
        %1417 = vmatprep.subr.mxu0 0.0
        %1418 = vmatpush1.msra.mxu0 0.0
        %1419 = vmatprep.subr.mxu0 0.0
        %1420 = vmatpush1.msra.mxu0 0.0
        %1421 = vmatprep.subr.mxu0 0.0
        %1422 = vmatpush1.msra.mxu0 0.0
        %1423 = vmatprep.subr.mxu0 0.0
        %1424 = vmatpush1.msra.mxu0 0.0
        %1425 = vmatprep.subr.mxu0 0.0
        %1426 = vmatpush1.msra.mxu0 0.0
        %1427 = vmatprep.mubr.f32.mxu0 0.0
        %1428 = vmatmul.mubr.f32.gmra.mrb[0].mxu0 %v1361
        %v1429 = vpop.f32.mrb[0].mxu0
        %v1430 = vadd.f32 %v1358, %v1429
        %v1431 = vpop.f32.mrb[0].mxu0
        %1432 = vdwg.mxu0
        %v1433 = vadd.f32 %v1309, %v1430
        %vm1434 = vcmp.gt.f32.partialorder %v1433, 0.0
        %v1435 = vmul.f32 %v1433, 0.1
        %v1436 = vsel %vm1434, %v1433, %v1435
        %v1437 = vld [vmem:[%s13] sm:$0x1]
        %1438 = vst.msk [vmem:[#allocation2] sm:$0xff] %vm1314, 0.0
        %1439 = vst.msk [vmem:[#allocation2 + $0x8] sm:$0xff] %vm1316, 0.0
        %1441 = vrot.lane.b32.xlu0 %v1436, 3
        %v1442 = vpop.permute.xlu0 %1441
        %1444 = vst.msk [vmem:[#allocation2] sm:$0xff] %vm1322, %v1442
        %1445 = vst.msk [vmem:[#allocation2 + $0x8] sm:$0xff] %vm1314, %v1442
        %v1446 = vld [vmem:[#allocation2] sm:$0xff]
        %1447 = vst [vmem:[#allocation3] sm:$0xff] %v1446
        %v1448 = vld [vmem:[#allocation2] sm:$0xff]
        %v1449 = vld [vmem:[#allocation2 + $0x8] sm:$0xff]
        %1452 = vrot.lane.b32.xlu0 %v1448, 127
        %v1453 = vpop.permute.xlu0 %1452
        %1454 = vrot.lane.b32.xlu0 %v1449, 127
        %v1455 = vpop.permute.xlu0 %1454
        %v1456 = vsel %vm1210, %v1453, %v1455
        %1458 = vst [vmem:[#allocation3 + $0x8] sm:$0xff] %v1456
        %v1459 = vld [vmem:[#allocation2] sm:$0xff]
        %v1460 = vld [vmem:[#allocation2 + $0x8] sm:$0xff]
        %1463 = vrot.lane.b32.xlu0 %v1459, 126
        %v1464 = vpop.permute.xlu0 %1463
        %1465 = vrot.lane.b32.xlu0 %v1460, 126
        %v1466 = vpop.permute.xlu0 %1465
        %v1467 = vsel %vm1222, %v1464, %v1466
        %1469 = vst [vmem:[#allocation3 + $0x10] sm:$0xff] %v1467
        %v1470 = vld [vmem:[#allocation2] sm:$0xff]
        %v1471 = vld [vmem:[#allocation2 + $0x8] sm:$0xff]
        %1474 = vrot.lane.b32.xlu0 %v1470, 125
        %v1475 = vpop.permute.xlu0 %1474
        %1476 = vrot.lane.b32.xlu0 %v1471, 125
        %v1477 = vpop.permute.xlu0 %1476
        %v1478 = vsel %vm1335, %v1475, %v1477
        %1480 = vst [vmem:[#allocation3 + $0x18] sm:$0xff] %v1478
        %v1481 = vld [vmem:[#allocation2] sm:$0xff]
        %v1482 = vld [vmem:[#allocation2 + $0x8] sm:$0xff]
        %1485 = vrot.lane.b32.xlu0 %v1481, 124
        %v1486 = vpop.permute.xlu0 %1485
        %1487 = vrot.lane.b32.xlu0 %v1482, 124
        %v1488 = vpop.permute.xlu0 %1487
        %vm1489 = vcmask 1014784
        %v1490 = vsel %vm1489, %v1486, %v1488
        %1492 = vst [vmem:[#allocation3 + $0x20] sm:$0xff] %v1490
        %v1493 = vld [vmem:[#allocation2] sm:$0xff]
        %v1494 = vld [vmem:[#allocation2 + $0x8] sm:$0xff]
        %1497 = vrot.lane.b32.xlu0 %v1493, 123
        %v1498 = vpop.permute.xlu0 %1497
        %1499 = vrot.lane.b32.xlu0 %v1494, 123
        %v1500 = vpop.permute.xlu0 %1499
        %vm1501 = vcmask 1006592
        %v1502 = vsel %vm1501, %v1498, %v1500
        %1504 = vst [vmem:[#allocation3 + $0x28] sm:$0xff] %v1502
        %v1505 = vld [vmem:[#allocation2] sm:$0xff]
        %v1506 = vld [vmem:[#allocation2 + $0x8] sm:$0xff]
        %1509 = vrot.lane.b32.xlu0 %v1505, 122
        %v1510 = vpop.permute.xlu0 %1509
        %1511 = vrot.lane.b32.xlu0 %v1506, 122
        %v1512 = vpop.permute.xlu0 %1511
        %v1513 = vsel %vm1347, %v1510, %v1512
        %1515 = vst [vmem:[#allocation3 + $0x30] sm:$0xff] %v1513
        %v1516 = vld [vmem:[#allocation3] sm:$0xff]
        %v1517 = vld [vmem:[#allocation3 + $0x8] sm:$0xff]
        %v1518 = vld [vmem:[#allocation3 + $0x10] sm:$0xff]
        %v1519 = vld [vmem:[#allocation3 + $0x18] sm:$0xff]
        %v1520 = vld [vmem:[#allocation3 + $0x20] sm:$0xff]
        %v1521 = vld [vmem:[#allocation3 + $0x28] sm:$0xff]
        %v1522 = vld [vmem:[#allocation3 + $0x30] sm:$0xff]
        %vm1523 = vcmask 457728
        %v1525 = vsel %vm1523, %v1437, 0
        %1527 = vmatprep.subr.mxu0 0.0
        %1528 = vmatpush1.msra.mxu0 %v1516
        %1529 = vmatprep.subr.mxu0 0.0
        %1530 = vmatpush1.msra.mxu0 %v1517
        %1531 = vmatprep.subr.mxu0 0.0
        %1532 = vmatpush1.msra.mxu0 %v1518
        %1533 = vmatprep.subr.mxu0 0.0
        %1534 = vmatpush1.msra.mxu0 %v1519
        %1535 = vmatprep.subr.mxu0 0.0
        %1536 = vmatpush1.msra.mxu0 %v1520
        %1537 = vmatprep.subr.mxu0 0.0
        %1538 = vmatpush1.msra.mxu0 %v1521
        %1539 = vmatprep.subr.mxu0 0.0
        %1540 = vmatpush1.msra.mxu0 %v1522
        %1541 = vmatprep.subr.mxu0 0.0
        %1542 = vmatpush1.msra.mxu0 0.0
        %1543 = vmatprep.subr.mxu0 0.0
        %1544 = vmatpush1.msra.mxu0 0.0
        %1545 = vmatprep.subr.mxu0 0.0
        %1546 = vmatpush1.msra.mxu0 0.0
        %1547 = vmatprep.subr.mxu0 0.0
        %1548 = vmatpush1.msra.mxu0 0.0
        %1549 = vmatprep.subr.mxu0 0.0
        %1550 = vmatpush1.msra.mxu0 0.0
        %1551 = vmatprep.subr.mxu0 0.0
        %1552 = vmatpush1.msra.mxu0 0.0
        %1553 = vmatprep.subr.mxu0 0.0
        %1554 = vmatpush1.msra.mxu0 0.0
        %1555 = vmatprep.subr.mxu0 0.0
        %1556 = vmatpush1.msra.mxu0 0.0
        %1557 = vmatprep.subr.mxu0 0.0
        %1558 = vmatpush1.msra.mxu0 0.0
        %1559 = vmatprep.subr.mxu0 0.0
        %1560 = vmatpush1.msra.mxu0 0.0
        %1561 = vmatprep.subr.mxu0 0.0
        %1562 = vmatpush1.msra.mxu0 0.0
        %1563 = vmatprep.subr.mxu0 0.0
        %1564 = vmatpush1.msra.mxu0 0.0
        %1565 = vmatprep.subr.mxu0 0.0
        %1566 = vmatpush1.msra.mxu0 0.0
        %1567 = vmatprep.subr.mxu0 0.0
        %1568 = vmatpush1.msra.mxu0 0.0
        %1569 = vmatprep.subr.mxu0 0.0
        %1570 = vmatpush1.msra.mxu0 0.0
        %1571 = vmatprep.subr.mxu0 0.0
        %1572 = vmatpush1.msra.mxu0 0.0
        %1573 = vmatprep.subr.mxu0 0.0
        %1574 = vmatpush1.msra.mxu0 0.0
        %1575 = vmatprep.subr.mxu0 0.0
        %1576 = vmatpush1.msra.mxu0 0.0
        %1577 = vmatprep.subr.mxu0 0.0
        %1578 = vmatpush1.msra.mxu0 0.0
        %1579 = vmatprep.subr.mxu0 0.0
        %1580 = vmatpush1.msra.mxu0 0.0
        %1581 = vmatprep.subr.mxu0 0.0
        %1582 = vmatpush1.msra.mxu0 0.0
        %1583 = vmatprep.subr.mxu0 0.0
        %1584 = vmatpush1.msra.mxu0 0.0
        %1585 = vmatprep.subr.mxu0 0.0
        %1586 = vmatpush1.msra.mxu0 0.0
        %1587 = vmatprep.subr.mxu0 0.0
        %1588 = vmatpush1.msra.mxu0 0.0
        %1589 = vmatprep.subr.mxu0 0.0
        %1590 = vmatpush1.msra.mxu0 0.0
        %1591 = vmatprep.mubr.f32.mxu0 0.0
        %1592 = vmatmul.mubr.f32.gmra.mrb[0].mxu0 %v1525
        %v1593 = vpop.f32.mrb[0].mxu0
        %v1594 = vadd.f32 0.0, %v1593
        %v1595 = vpop.f32.mrb[0].mxu0
        %1596 = vdwg.mxu0
        %v1597 = vtanh.pop %v1594
        %1598 = vst [vmem:[%s470] sm:$0x1] %v1597
        %s1599 = sand.u32 %s340, 1
        %s1600 = scalar_lea.sflag [#allocation5], %s1599
        %s1601 = sand.u32 %s340, 1
        %s1602 = scalar_lea.vmem [#allocation4], %s1601
        // Predicated region
        $region77: #{tpu_custom_call.1} parent=75 // pred_check
          %p1603 = pneg %p350
        $region78: #{tpu_custom_call.1} parent=75 // pred_check_branch
          %1605 = sbr.rel (%p1603) target = $region80
        $region79: #{tpu_custom_call.1} parent=75 // pred_region
          %s1607 = ssub.s32 16, 16
          %1608 = vsyncadd %s1600, %s1607
          %s1609 = smul.addr %s28, 16
          %s1610 = scalar_lea.hbm %s14, %s1609
          %s1612 = sshll.u32 %s1602, 4
          %s1613 = int_to_ptr.vmem [resolvable:$true] %s1612
          %1615 = dma.vmem_to_hbm [thread:$0]  %s1613, 16, %s1610, %s1600
        $region80: #{tpu_custom_call.1} parent=75 // pred_fallthru
          _
      $region76: #{tpu_custom_call.1} parent=5 // pred_fallthru
        _
      %p1616 = scmp.le.s32.totalorder 2, %s23
      // Predicated region
      $region81: #{tpu_custom_call.1} parent=5 // pred_check
        %p1617 = pneg %p1616
      $region82: #{tpu_custom_call.1} parent=5 // pred_check_branch
        %1619 = sbr.rel (%p1617) target = $region84
      $region83: #{tpu_custom_call.1} parent=5 // pred_region
        %s1620 = ssub.s32 %s23, 2
        // Predicated region
        $region85: #{tpu_custom_call.1} parent=83 // pred_check
          %p1621 = pneg %p356
        $region86: #{tpu_custom_call.1} parent=83 // pred_check_branch
          %1623 = sbr.rel (%p1621) target = $region88
        $region87: #{tpu_custom_call.1} parent=83 // pred_region
          %s1624 = sand.u32 %s341, 1
          %s1625 = scalar_lea.sflag [#allocation5], %s1624
          %s1626 = sand.u32 %s341, 1
          %s1627 = scalar_lea.vmem [#allocation4], %s1626
          %1628 = dma.done %s1625, 16
        $region88: #{tpu_custom_call.1} parent=83 // pred_fallthru
          _
      $region84: #{tpu_custom_call.1} parent=5 // pred_fallthru
        _
    $region6: #{tpu_custom_call.1} parent=1 // loop_footer
      %s27 = sadd.s32 1, %s23
    $region7: #{tpu_custom_call.1} parent=1 // loop_footer_branch
      %22 = sbr.rel target = $region3
    $region8: #{tpu_custom_call.1} parent=1 // loop_exit
      _
    %1629 = vsyncpa [#allocation5], 1
    %s1630 = scalar_lea.sflag [#allocation5], 1
    %1631 = vsyncpa %s1630, 1

</llo_original>
